<compile_context>
chip_gen: v5e
topology: v5e:2x2
jax: 0.10.0
libtpu: 0.0.40
codegen_flags: <defaults>
</compile_context>

<pallas_src>
import math

import jax
import jax.numpy as jnp
from jax.experimental import pallas as pl
from jax.experimental.pallas import tpu as pltpu

# Deterministic "utils" constants for this synthetic kernel.
CODON_VOCAB_MAX = 65         # 64 codons + specials
PADDING = 0
VOCAB = CODON_VOCAB_MAX + 1  # 66


def _codon_onehot_kernel(x_ref, o_ref):
    # x_ref: (tile_rows, 128)     int32  -- token indices
    # o_ref: (tile_rows, 128, V)  out    -- one-hot, vocab on the lane axis
    idx = x_ref[...][..., None]                                     # (r,128,1)
    iota = jax.lax.broadcasted_iota(jnp.int32, o_ref.shape, 2)      # V on lanes
    onehot = (iota == idx) & (idx != PADDING)                       # (r,128,V)
    o_ref[...] = onehot.astype(o_ref.dtype)


def make_one_hot_embedding(vocab_size: int = VOCAB,
                           padding_idx: int = PADDING) -> jnp.ndarray:
    """Deterministic parameter init, mirrors CodonOneHotEncoder.__init__.

    Only used as the pure-JAX reference; the kernel fuses the table away.
    """
    ident = jnp.eye(vocab_size, dtype=jnp.float32)
    ident = ident.at[padding_idx].set(0.0)
    return ident


def codon_one_hot_encode(x: jnp.ndarray,
                         tile_rows: int = 64,          # 64*128 = 8192 tokens/step
                         out_dtype=jnp.float32) -> jnp.ndarray:
    """Pallas implementation of CodonOneHotEncoder.forward.

    x: integer indices in [0, V), any shape.
    returns x.shape + (V,) in out_dtype (float32 to match torch.eye default).
    """
    assert tile_rows % 8 == 0 and tile_rows > 0, "tile_rows must be a multiple of 8"
    orig_shape = x.shape
    v = VOCAB
    n = math.prod(orig_shape) if orig_shape else 1

    # Token rows of 128 (lane-width granularity of the index input).
    rows = max(1, -(-n // 128))
    # Clamp tile_rows so the grid has >= 2 steps when the input allows it
    # (keeps both v7x TensorCores busy); round the half up to a multiple of 8.
    half_rows = -(-(-(-rows // 2)) // 8) * 8
    tile_rows = max(8, min(tile_rows, half_rows))
    rows_pad = -(-rows // tile_rows) * tile_rows
    n_pad = rows_pad * 128

    # Flatten + pad tail with PADDING (-> zero rows, sliced off afterwards).
    x_flat = x.reshape(-1).astype(jnp.int32)
    if n_pad > n:
        x_flat = jnp.pad(x_flat, (0, n_pad - n), constant_values=PADDING)
    x2 = x_flat.reshape(rows_pad, 128)

    out = pl.pallas_call(
        _codon_onehot_kernel,
        out_shape=jax.ShapeDtypeStruct((rows_pad, 128, v), out_dtype),
        grid=(rows_pad // tile_rows,),
        in_specs=[
            pl.BlockSpec((tile_rows, 128), lambda i: (i, 0)),        # indices
        ],
        out_specs=pl.BlockSpec((tile_rows, 128, v), lambda i: (i, 0, 0)),
        compiler_params=pltpu.CompilerParams(
            dimension_semantics=("parallel",)),
    )(x2)

    # Contiguous (free) reshape to token-major, drop the pad tail.
    out = out.reshape(n_pad, v)
    if n_pad > n:
        out = out[:n]
    return out.reshape(*orig_shape, v)


if __name__ == "__main__":
    key = jax.random.PRNGKey(0)
    B, S = 2, 8
    x = jax.random.randint(key, (B, S), minval=0, maxval=VOCAB, dtype=jnp.int32)
    # Make sure at least one PADDING token exercises the zeroed row.
    x = x.at[0, 0].set(PADDING)

    y = codon_one_hot_encode(x)
    y = jax.block_until_ready(y)

    # Reference: plain gather, identical to torch's self.one_hot_embedding[x].
    emb = make_one_hot_embedding()
    y_ref = emb[x]

    assert y.shape == (B, S, VOCAB), y.shape
    assert y.dtype == jnp.float32, y.dtype
    assert jnp.allclose(y, y_ref), "mismatch vs reference gather"
    # Padding tokens must map to all-zero rows.
    assert jnp.all(jnp.where(x[..., None] == PADDING, y, 0.0) == 0.0)

    print("KERNEL_OK")
</pallas_src>

<mosaic_0001>
module attributes {stable_mosaic.version = 11 : i64} {
  func.func @_codon_onehot_kernel(%arg0: i32, %arg1: memref<8x128xi32, #tpu.memory_space<vmem>>, %arg2: memref<8x128x66xf32, #tpu.memory_space<vmem>>) attributes {dimension_semantics = [#tpu.dimension_semantics<parallel>], iteration_bounds = array<i64: 1>, scalar_prefetch = 0 : i64, scratch_operands = 0 : i64, tpu.core_type = #tpu.core_type<tc>, window_params = [{transform_indices = @transform_0, window_bounds = array<i64: 8, 128>}, {transform_indices = @transform_1, window_bounds = array<i64: 8, 128, 66>}]} {
    %c0 = arith.constant 0 : index
    %c0_0 = arith.constant 0 : index
    %0 = vector.load %arg1[%c0, %c0_0] : memref<8x128xi32, #tpu.memory_space<vmem>>, vector<8x128xi32>
    %1 = vector.shape_cast %0 : vector<8x128xi32> to vector<8x128x1xi32>
    %2 = tpu.iota {dimensions = array<i32: 2>} : vector<8x128x66xi32>
    %3 = vector.broadcast %1 : vector<8x128x1xi32> to vector<8x128x66xi32>
    %4 = arith.cmpi eq, %2, %3 : vector<8x128x66xi32>
    %c0_i32 = arith.constant 0 : i32
    %5 = vector.broadcast %c0_i32 : i32 to vector<8x128x1xi32>
    %6 = arith.cmpi ne, %1, %5 : vector<8x128x1xi32>
    %7 = vector.broadcast %6 : vector<8x128x1xi1> to vector<8x128x66xi1>
    %8 = arith.andi %4, %7 : vector<8x128x66xi1>
    %9 = arith.extui %8 : vector<8x128x66xi1> to vector<8x128x66xi32>
    %10 = arith.sitofp %9 : vector<8x128x66xi32> to vector<8x128x66xf32>
    %c0_1 = arith.constant 0 : index
    %c0_2 = arith.constant 0 : index
    %c0_3 = arith.constant 0 : index
    %11 = vector.load %arg2[%c0_1, %c0_2, %c0_3] : memref<8x128x66xf32, #tpu.memory_space<vmem>>, vector<8x128x66xf32>
    tpu.vector_store %arg2[%c0_1, %c0_2, %c0_3], %10 {strides = array<i32>} : memref<8x128x66xf32, #tpu.memory_space<vmem>>, vector<8x128x66xf32>,
    return
  }
  func.func @transform_0(%arg0: i32) -> (i32, i32) {
    %c0_i32 = arith.constant 0 : i32
    %c0_i32_0 = arith.constant 0 : i32
    return %arg0, %c0_i32 : i32, i32
  }
  func.func @transform_1(%arg0: i32) -> (i32, i32, i32) {
    %c0_i32 = arith.constant 0 : i32
    %c0_i32_0 = arith.constant 0 : i32
    %c0_i32_1 = arith.constant 0 : i32
    return %arg0, %c0_i32, %c0_i32_0 : i32, i32, i32
  }
}

</mosaic_0001>

<llo_original>
// kernel: tpu_custom_call.1
$region0: #{tpu_custom_call.1}
  #allocation0 [shape = 'u32[]', space=smem, size = 0x4, offset = 0x4, fixed_abs, tag = 'smem constant byte address 0x4 - core index']
  #allocation1 [shape = 'u32[72,128]{1,0:T(1,128)}', space=vmem, size = 0x9000, scoped, tag = 'internal scratch']
  %s0 = inlined_call_operand.hbm [shape: s32[8,128], index: 0, kind: input, shape index: {}]
  %s1 = inlined_call_operand.vmem [shape: f32[8,128,66], index: 1, kind: output, shape index: {}]
  %s2 = sld [smem:[#allocation0]]
  $region18: #{tpu_custom_call.1} parent=0
    _
  %s4 = ssub.s32 1, %s2
  %s5 = scalar_select 0, %s4, %s2
  $region1: #{tpu_custom_call.1} parent=0
    #allocation2 [shape = 'u8[4096]{0}', space=vmem, size = 0x1000, scoped, tag = 'input window, operand 0, single buffered']
    #allocation3 [shape = 's32[1]{0}', space=sflag, size = 0x4, scoped, tag = 'scoped memory for tpu_custom_call.1']
    %6 = vsyncpa [#allocation3], 0
    // Predicated region
    $region2: #{tpu_custom_call.1} parent=1 // pred_check
      _
    $region3: #{tpu_custom_call.1} parent=1 // pred_check_branch
      %8 = sbr.rel (0) target = $region5
    $region4: #{tpu_custom_call.1} parent=1 // pred_region
      %10 = vsyncadd [#allocation3], 0
      %s12 = sshll.u32 %s0, 4
      %s13 = int_to_ptr.hbm [resolvable:$true] %s12
      %s14 = sshll.u32 [#allocation2], 4
      %s15 = int_to_ptr.vmem [resolvable:$true] %s14
      %17 = dma.hbm_to_vmem [thread:$0]  %s13, 128, %s15, [#allocation3]
    $region5: #{tpu_custom_call.1} parent=1 // pred_fallthru
      _
    // Predicated region
    $region6: #{tpu_custom_call.1} parent=1 // pred_check
      _
    $region7: #{tpu_custom_call.1} parent=1 // pred_check_branch
      %19 = sbr.rel (0) target = $region9
    $region8: #{tpu_custom_call.1} parent=1 // pred_region
      %21 = dma.done [#allocation3], 128
    $region9: #{tpu_custom_call.1} parent=1 // pred_fallthru
      _
    %v22 = vld [vmem:[#allocation2] sm:$0xff]
    %v23 = vperm.slane %v22, 0
    %v24 = vlaneseq
    %v25 = vshrl.u32 %v24, 7
    %27 = vset.pattern.permute.xlu0 %v25
    %28 = vperm.xlu0 %27, %v23
    %v29 = vpop.permute.xlu0 %28
    %v30 = vlaneseq
    %v31 = vshrl.u32 %v30, 7
    %v32 = vadd.s32 %v31, 8
    %33 = vset.pattern.permute.xlu0 %v32
    %34 = vperm.xlu0 %33, %v23
    %v35 = vpop.permute.xlu0 %34
    %v36 = vlaneseq
    %v37 = vshrl.u32 %v36, 7
    %v38 = vadd.s32 %v37, 16
    %39 = vset.pattern.permute.xlu0 %v38
    %40 = vperm.xlu0 %39, %v23
    %v41 = vpop.permute.xlu0 %40
    %v42 = vlaneseq
    %v43 = vshrl.u32 %v42, 7
    %v44 = vadd.s32 %v43, 24
    %45 = vset.pattern.permute.xlu0 %v44
    %46 = vperm.xlu0 %45, %v23
    %v47 = vpop.permute.xlu0 %46
    %v48 = vlaneseq
    %v49 = vshrl.u32 %v48, 7
    %v50 = vadd.s32 %v49, 32
    %51 = vset.pattern.permute.xlu0 %v50
    %52 = vperm.xlu0 %51, %v23
    %v53 = vpop.permute.xlu0 %52
    %v54 = vlaneseq
    %v55 = vshrl.u32 %v54, 7
    %v56 = vadd.s32 %v55, 40
    %57 = vset.pattern.permute.xlu0 %v56
    %58 = vperm.xlu0 %57, %v23
    %v59 = vpop.permute.xlu0 %58
    %v60 = vlaneseq
    %v61 = vshrl.u32 %v60, 7
    %v62 = vadd.s32 %v61, 48
    %63 = vset.pattern.permute.xlu0 %v62
    %64 = vperm.xlu0 %63, %v23
    %v65 = vpop.permute.xlu0 %64
    %v66 = vlaneseq
    %v67 = vshrl.u32 %v66, 7
    %v68 = vadd.s32 %v67, 56
    %69 = vset.pattern.permute.xlu0 %v68
    %70 = vperm.xlu0 %69, %v23
    %v71 = vpop.permute.xlu0 %70
    %v72 = vlaneseq
    %v73 = vshrl.u32 %v72, 7
    %v74 = vadd.s32 %v73, 64
    %75 = vset.pattern.permute.xlu0 %v74
    %76 = vperm.xlu0 %75, %v23
    %v77 = vpop.permute.xlu0 %76
    %v78 = vlaneseq
    %v79 = vshrl.u32 %v78, 7
    %v80 = vadd.s32 %v79, 72
    %81 = vset.pattern.permute.xlu0 %v80
    %82 = vperm.xlu0 %81, %v23
    %v83 = vpop.permute.xlu0 %82
    %v84 = vlaneseq
    %v85 = vshrl.u32 %v84, 7
    %v86 = vadd.s32 %v85, 80
    %87 = vset.pattern.permute.xlu0 %v86
    %88 = vperm.xlu0 %87, %v23
    %v89 = vpop.permute.xlu0 %88
    %v90 = vlaneseq
    %v91 = vshrl.u32 %v90, 7
    %v92 = vadd.s32 %v91, 88
    %93 = vset.pattern.permute.xlu0 %v92
    %94 = vperm.xlu0 %93, %v23
    %v95 = vpop.permute.xlu0 %94
    %v96 = vlaneseq
    %v97 = vshrl.u32 %v96, 7
    %v98 = vadd.s32 %v97, 96
    %99 = vset.pattern.permute.xlu0 %v98
    %100 = vperm.xlu0 %99, %v23
    %v101 = vpop.permute.xlu0 %100
    %v102 = vlaneseq
    %v103 = vshrl.u32 %v102, 7
    %v104 = vadd.s32 %v103, 104
    %105 = vset.pattern.permute.xlu0 %v104
    %106 = vperm.xlu0 %105, %v23
    %v107 = vpop.permute.xlu0 %106
    %v108 = vlaneseq
    %v109 = vshrl.u32 %v108, 7
    %v110 = vadd.s32 %v109, 112
    %111 = vset.pattern.permute.xlu0 %v110
    %112 = vperm.xlu0 %111, %v23
    %v113 = vpop.permute.xlu0 %112
    %v114 = vlaneseq
    %v115 = vshrl.u32 %v114, 7
    %v116 = vadd.s32 %v115, 120
    %117 = vset.pattern.permute.xlu0 %v116
    %118 = vperm.xlu0 %117, %v23
    %v119 = vpop.permute.xlu0 %118
    %v120 = vperm.slane %v22, 1
    %v121 = vlaneseq
    %v122 = vshrl.u32 %v121, 7
    %124 = vset.pattern.permute.xlu0 %v122
    %125 = vperm.xlu0 %124, %v120
    %v126 = vpop.permute.xlu0 %125
    %v127 = vlaneseq
    %v128 = vshrl.u32 %v127, 7
    %v129 = vadd.s32 %v128, 8
    %130 = vset.pattern.permute.xlu0 %v129
    %131 = vperm.xlu0 %130, %v120
    %v132 = vpop.permute.xlu0 %131
    %v133 = vlaneseq
    %v134 = vshrl.u32 %v133, 7
    %v135 = vadd.s32 %v134, 16
    %136 = vset.pattern.permute.xlu0 %v135
    %137 = vperm.xlu0 %136, %v120
    %v138 = vpop.permute.xlu0 %137
    %v139 = vlaneseq
    %v140 = vshrl.u32 %v139, 7
    %v141 = vadd.s32 %v140, 24
    %142 = vset.pattern.permute.xlu0 %v141
    %143 = vperm.xlu0 %142, %v120
    %v144 = vpop.permute.xlu0 %143
    %v145 = vlaneseq
    %v146 = vshrl.u32 %v145, 7
    %v147 = vadd.s32 %v146, 32
    %148 = vset.pattern.permute.xlu0 %v147
    %149 = vperm.xlu0 %148, %v120
    %v150 = vpop.permute.xlu0 %149
    %v151 = vlaneseq
    %v152 = vshrl.u32 %v151, 7
    %v153 = vadd.s32 %v152, 40
    %154 = vset.pattern.permute.xlu0 %v153
    %155 = vperm.xlu0 %154, %v120
    %v156 = vpop.permute.xlu0 %155
    %v157 = vlaneseq
    %v158 = vshrl.u32 %v157, 7
    %v159 = vadd.s32 %v158, 48
    %160 = vset.pattern.permute.xlu0 %v159
    %161 = vperm.xlu0 %160, %v120
    %v162 = vpop.permute.xlu0 %161
    %v163 = vlaneseq
    %v164 = vshrl.u32 %v163, 7
    %v165 = vadd.s32 %v164, 56
    %166 = vset.pattern.permute.xlu0 %v165
    %167 = vperm.xlu0 %166, %v120
    %v168 = vpop.permute.xlu0 %167
    %v169 = vlaneseq
    %v170 = vshrl.u32 %v169, 7
    %v171 = vadd.s32 %v170, 64
    %172 = vset.pattern.permute.xlu0 %v171
    %173 = vperm.xlu0 %172, %v120
    %v174 = vpop.permute.xlu0 %173
    %v175 = vlaneseq
    %v176 = vshrl.u32 %v175, 7
    %v177 = vadd.s32 %v176, 72
    %178 = vset.pattern.permute.xlu0 %v177
    %179 = vperm.xlu0 %178, %v120
    %v180 = vpop.permute.xlu0 %179
    %v181 = vlaneseq
    %v182 = vshrl.u32 %v181, 7
    %v183 = vadd.s32 %v182, 80
    %184 = vset.pattern.permute.xlu0 %v183
    %185 = vperm.xlu0 %184, %v120
    %v186 = vpop.permute.xlu0 %185
    %v187 = vlaneseq
    %v188 = vshrl.u32 %v187, 7
    %v189 = vadd.s32 %v188, 88
    %190 = vset.pattern.permute.xlu0 %v189
    %191 = vperm.xlu0 %190, %v120
    %v192 = vpop.permute.xlu0 %191
    %v193 = vlaneseq
    %v194 = vshrl.u32 %v193, 7
    %v195 = vadd.s32 %v194, 96
    %196 = vset.pattern.permute.xlu0 %v195
    %197 = vperm.xlu0 %196, %v120
    %v198 = vpop.permute.xlu0 %197
    %v199 = vlaneseq
    %v200 = vshrl.u32 %v199, 7
    %v201 = vadd.s32 %v200, 104
    %202 = vset.pattern.permute.xlu0 %v201
    %203 = vperm.xlu0 %202, %v120
    %v204 = vpop.permute.xlu0 %203
    %v205 = vlaneseq
    %v206 = vshrl.u32 %v205, 7
    %v207 = vadd.s32 %v206, 112
    %208 = vset.pattern.permute.xlu0 %v207
    %209 = vperm.xlu0 %208, %v120
    %v210 = vpop.permute.xlu0 %209
    %v211 = vlaneseq
    %v212 = vshrl.u32 %v211, 7
    %v213 = vadd.s32 %v212, 120
    %214 = vset.pattern.permute.xlu0 %v213
    %215 = vperm.xlu0 %214, %v120
    %v216 = vpop.permute.xlu0 %215
    %v217 = vperm.slane %v22, 2
    %v218 = vlaneseq
    %v219 = vshrl.u32 %v218, 7
    %221 = vset.pattern.permute.xlu0 %v219
    %222 = vperm.xlu0 %221, %v217
    %v223 = vpop.permute.xlu0 %222
    %v224 = vlaneseq
    %v225 = vshrl.u32 %v224, 7
    %v226 = vadd.s32 %v225, 8
    %227 = vset.pattern.permute.xlu0 %v226
    %228 = vperm.xlu0 %227, %v217
    %v229 = vpop.permute.xlu0 %228
    %v230 = vlaneseq
    %v231 = vshrl.u32 %v230, 7
    %v232 = vadd.s32 %v231, 16
    %233 = vset.pattern.permute.xlu0 %v232
    %234 = vperm.xlu0 %233, %v217
    %v235 = vpop.permute.xlu0 %234
    %v236 = vlaneseq
    %v237 = vshrl.u32 %v236, 7
    %v238 = vadd.s32 %v237, 24
    %239 = vset.pattern.permute.xlu0 %v238
    %240 = vperm.xlu0 %239, %v217
    %v241 = vpop.permute.xlu0 %240
    %v242 = vlaneseq
    %v243 = vshrl.u32 %v242, 7
    %v244 = vadd.s32 %v243, 32
    %245 = vset.pattern.permute.xlu0 %v244
    %246 = vperm.xlu0 %245, %v217
    %v247 = vpop.permute.xlu0 %246
    %v248 = vlaneseq
    %v249 = vshrl.u32 %v248, 7
    %v250 = vadd.s32 %v249, 40
    %251 = vset.pattern.permute.xlu0 %v250
    %252 = vperm.xlu0 %251, %v217
    %v253 = vpop.permute.xlu0 %252
    %v254 = vlaneseq
    %v255 = vshrl.u32 %v254, 7
    %v256 = vadd.s32 %v255, 48
    %257 = vset.pattern.permute.xlu0 %v256
    %258 = vperm.xlu0 %257, %v217
    %v259 = vpop.permute.xlu0 %258
    %v260 = vlaneseq
    %v261 = vshrl.u32 %v260, 7
    %v262 = vadd.s32 %v261, 56
    %263 = vset.pattern.permute.xlu0 %v262
    %264 = vperm.xlu0 %263, %v217
    %v265 = vpop.permute.xlu0 %264
    %v266 = vlaneseq
    %v267 = vshrl.u32 %v266, 7
    %v268 = vadd.s32 %v267, 64
    %269 = vset.pattern.permute.xlu0 %v268
    %270 = vperm.xlu0 %269, %v217
    %v271 = vpop.permute.xlu0 %270
    %v272 = vlaneseq
    %v273 = vshrl.u32 %v272, 7
    %v274 = vadd.s32 %v273, 72
    %275 = vset.pattern.permute.xlu0 %v274
    %276 = vperm.xlu0 %275, %v217
    %v277 = vpop.permute.xlu0 %276
    %v278 = vlaneseq
    %v279 = vshrl.u32 %v278, 7
    %v280 = vadd.s32 %v279, 80
    %281 = vset.pattern.permute.xlu0 %v280
    %282 = vperm.xlu0 %281, %v217
    %v283 = vpop.permute.xlu0 %282
    %v284 = vlaneseq
    %v285 = vshrl.u32 %v284, 7
    %v286 = vadd.s32 %v285, 88
    %287 = vset.pattern.permute.xlu0 %v286
    %288 = vperm.xlu0 %287, %v217
    %v289 = vpop.permute.xlu0 %288
    %v290 = vlaneseq
    %v291 = vshrl.u32 %v290, 7
    %v292 = vadd.s32 %v291, 96
    %293 = vset.pattern.permute.xlu0 %v292
    %294 = vperm.xlu0 %293, %v217
    %v295 = vpop.permute.xlu0 %294
    %v296 = vlaneseq
    %v297 = vshrl.u32 %v296, 7
    %v298 = vadd.s32 %v297, 104
    %299 = vset.pattern.permute.xlu0 %v298
    %300 = vperm.xlu0 %299, %v217
    %v301 = vpop.permute.xlu0 %300
    %v302 = vlaneseq
    %v303 = vshrl.u32 %v302, 7
    %v304 = vadd.s32 %v303, 112
    %305 = vset.pattern.permute.xlu0 %v304
    %306 = vperm.xlu0 %305, %v217
    %v307 = vpop.permute.xlu0 %306
    %v308 = vlaneseq
    %v309 = vshrl.u32 %v308, 7
    %v310 = vadd.s32 %v309, 120
    %311 = vset.pattern.permute.xlu0 %v310
    %312 = vperm.xlu0 %311, %v217
    %v313 = vpop.permute.xlu0 %312
    %v314 = vperm.slane %v22, 3
    %v315 = vlaneseq
    %v316 = vshrl.u32 %v315, 7
    %318 = vset.pattern.permute.xlu0 %v316
    %319 = vperm.xlu0 %318, %v314
    %v320 = vpop.permute.xlu0 %319
    %v321 = vlaneseq
    %v322 = vshrl.u32 %v321, 7
    %v323 = vadd.s32 %v322, 8
    %324 = vset.pattern.permute.xlu0 %v323
    %325 = vperm.xlu0 %324, %v314
    %v326 = vpop.permute.xlu0 %325
    %v327 = vlaneseq
    %v328 = vshrl.u32 %v327, 7
    %v329 = vadd.s32 %v328, 16
    %330 = vset.pattern.permute.xlu0 %v329
    %331 = vperm.xlu0 %330, %v314
    %v332 = vpop.permute.xlu0 %331
    %v333 = vlaneseq
    %v334 = vshrl.u32 %v333, 7
    %v335 = vadd.s32 %v334, 24
    %336 = vset.pattern.permute.xlu0 %v335
    %337 = vperm.xlu0 %336, %v314
    %v338 = vpop.permute.xlu0 %337
    %v339 = vlaneseq
    %v340 = vshrl.u32 %v339, 7
    %v341 = vadd.s32 %v340, 32
    %342 = vset.pattern.permute.xlu0 %v341
    %343 = vperm.xlu0 %342, %v314
    %v344 = vpop.permute.xlu0 %343
    %v345 = vlaneseq
    %v346 = vshrl.u32 %v345, 7
    %v347 = vadd.s32 %v346, 40
    %348 = vset.pattern.permute.xlu0 %v347
    %349 = vperm.xlu0 %348, %v314
    %v350 = vpop.permute.xlu0 %349
    %v351 = vlaneseq
    %v352 = vshrl.u32 %v351, 7
    %v353 = vadd.s32 %v352, 48
    %354 = vset.pattern.permute.xlu0 %v353
    %355 = vperm.xlu0 %354, %v314
    %v356 = vpop.permute.xlu0 %355
    %v357 = vlaneseq
    %v358 = vshrl.u32 %v357, 7
    %v359 = vadd.s32 %v358, 56
    %360 = vset.pattern.permute.xlu0 %v359
    %361 = vperm.xlu0 %360, %v314
    %v362 = vpop.permute.xlu0 %361
    %v363 = vlaneseq
    %v364 = vshrl.u32 %v363, 7
    %v365 = vadd.s32 %v364, 64
    %366 = vset.pattern.permute.xlu0 %v365
    %367 = vperm.xlu0 %366, %v314
    %v368 = vpop.permute.xlu0 %367
    %v369 = vlaneseq
    %v370 = vshrl.u32 %v369, 7
    %v371 = vadd.s32 %v370, 72
    %372 = vset.pattern.permute.xlu0 %v371
    %373 = vperm.xlu0 %372, %v314
    %v374 = vpop.permute.xlu0 %373
    %v375 = vlaneseq
    %v376 = vshrl.u32 %v375, 7
    %v377 = vadd.s32 %v376, 80
    %378 = vset.pattern.permute.xlu0 %v377
    %379 = vperm.xlu0 %378, %v314
    %v380 = vpop.permute.xlu0 %379
    %v381 = vlaneseq
    %v382 = vshrl.u32 %v381, 7
    %v383 = vadd.s32 %v382, 88
    %384 = vset.pattern.permute.xlu0 %v383
    %385 = vperm.xlu0 %384, %v314
    %v386 = vpop.permute.xlu0 %385
    %v387 = vlaneseq
    %v388 = vshrl.u32 %v387, 7
    %v389 = vadd.s32 %v388, 96
    %390 = vset.pattern.permute.xlu0 %v389
    %391 = vperm.xlu0 %390, %v314
    %v392 = vpop.permute.xlu0 %391
    %v393 = vlaneseq
    %v394 = vshrl.u32 %v393, 7
    %v395 = vadd.s32 %v394, 104
    %396 = vset.pattern.permute.xlu0 %v395
    %397 = vperm.xlu0 %396, %v314
    %v398 = vpop.permute.xlu0 %397
    %v399 = vlaneseq
    %v400 = vshrl.u32 %v399, 7
    %v401 = vadd.s32 %v400, 112
    %402 = vset.pattern.permute.xlu0 %v401
    %403 = vperm.xlu0 %402, %v314
    %v404 = vpop.permute.xlu0 %403
    %v405 = vlaneseq
    %v406 = vshrl.u32 %v405, 7
    %v407 = vadd.s32 %v406, 120
    %408 = vset.pattern.permute.xlu0 %v407
    %409 = vperm.xlu0 %408, %v314
    %v410 = vpop.permute.xlu0 %409
    %v411 = vperm.slane %v22, 4
    %v412 = vlaneseq
    %v413 = vshrl.u32 %v412, 7
    %415 = vset.pattern.permute.xlu0 %v413
    %416 = vperm.xlu0 %415, %v411
    %v417 = vpop.permute.xlu0 %416
    %v418 = vlaneseq
    %v419 = vshrl.u32 %v418, 7
    %v420 = vadd.s32 %v419, 8
    %421 = vset.pattern.permute.xlu0 %v420
    %422 = vperm.xlu0 %421, %v411
    %v423 = vpop.permute.xlu0 %422
    %v424 = vlaneseq
    %v425 = vshrl.u32 %v424, 7
    %v426 = vadd.s32 %v425, 16
    %427 = vset.pattern.permute.xlu0 %v426
    %428 = vperm.xlu0 %427, %v411
    %v429 = vpop.permute.xlu0 %428
    %v430 = vlaneseq
    %v431 = vshrl.u32 %v430, 7
    %v432 = vadd.s32 %v431, 24
    %433 = vset.pattern.permute.xlu0 %v432
    %434 = vperm.xlu0 %433, %v411
    %v435 = vpop.permute.xlu0 %434
    %v436 = vlaneseq
    %v437 = vshrl.u32 %v436, 7
    %v438 = vadd.s32 %v437, 32
    %439 = vset.pattern.permute.xlu0 %v438
    %440 = vperm.xlu0 %439, %v411
    %v441 = vpop.permute.xlu0 %440
    %v442 = vlaneseq
    %v443 = vshrl.u32 %v442, 7
    %v444 = vadd.s32 %v443, 40
    %445 = vset.pattern.permute.xlu0 %v444
    %446 = vperm.xlu0 %445, %v411
    %v447 = vpop.permute.xlu0 %446
    %v448 = vlaneseq
    %v449 = vshrl.u32 %v448, 7
    %v450 = vadd.s32 %v449, 48
    %451 = vset.pattern.permute.xlu0 %v450
    %452 = vperm.xlu0 %451, %v411
    %v453 = vpop.permute.xlu0 %452
    %v454 = vlaneseq
    %v455 = vshrl.u32 %v454, 7
    %v456 = vadd.s32 %v455, 56
    %457 = vset.pattern.permute.xlu0 %v456
    %458 = vperm.xlu0 %457, %v411
    %v459 = vpop.permute.xlu0 %458
    %v460 = vlaneseq
    %v461 = vshrl.u32 %v460, 7
    %v462 = vadd.s32 %v461, 64
    %463 = vset.pattern.permute.xlu0 %v462
    %464 = vperm.xlu0 %463, %v411
    %v465 = vpop.permute.xlu0 %464
    %v466 = vlaneseq
    %v467 = vshrl.u32 %v466, 7
    %v468 = vadd.s32 %v467, 72
    %469 = vset.pattern.permute.xlu0 %v468
    %470 = vperm.xlu0 %469, %v411
    %v471 = vpop.permute.xlu0 %470
    %v472 = vlaneseq
    %v473 = vshrl.u32 %v472, 7
    %v474 = vadd.s32 %v473, 80
    %475 = vset.pattern.permute.xlu0 %v474
    %476 = vperm.xlu0 %475, %v411
    %v477 = vpop.permute.xlu0 %476
    %v478 = vlaneseq
    %v479 = vshrl.u32 %v478, 7
    %v480 = vadd.s32 %v479, 88
    %481 = vset.pattern.permute.xlu0 %v480
    %482 = vperm.xlu0 %481, %v411
    %v483 = vpop.permute.xlu0 %482
    %v484 = vlaneseq
    %v485 = vshrl.u32 %v484, 7
    %v486 = vadd.s32 %v485, 96
    %487 = vset.pattern.permute.xlu0 %v486
    %488 = vperm.xlu0 %487, %v411
    %v489 = vpop.permute.xlu0 %488
    %v490 = vlaneseq
    %v491 = vshrl.u32 %v490, 7
    %v492 = vadd.s32 %v491, 104
    %493 = vset.pattern.permute.xlu0 %v492
    %494 = vperm.xlu0 %493, %v411
    %v495 = vpop.permute.xlu0 %494
    %v496 = vlaneseq
    %v497 = vshrl.u32 %v496, 7
    %v498 = vadd.s32 %v497, 112
    %499 = vset.pattern.permute.xlu0 %v498
    %500 = vperm.xlu0 %499, %v411
    %v501 = vpop.permute.xlu0 %500
    %v502 = vlaneseq
    %v503 = vshrl.u32 %v502, 7
    %v504 = vadd.s32 %v503, 120
    %505 = vset.pattern.permute.xlu0 %v504
    %506 = vperm.xlu0 %505, %v411
    %v507 = vpop.permute.xlu0 %506
    %v508 = vperm.slane %v22, 5
    %v509 = vlaneseq
    %v510 = vshrl.u32 %v509, 7
    %512 = vset.pattern.permute.xlu0 %v510
    %513 = vperm.xlu0 %512, %v508
    %v514 = vpop.permute.xlu0 %513
    %v515 = vlaneseq
    %v516 = vshrl.u32 %v515, 7
    %v517 = vadd.s32 %v516, 8
    %518 = vset.pattern.permute.xlu0 %v517
    %519 = vperm.xlu0 %518, %v508
    %v520 = vpop.permute.xlu0 %519
    %v521 = vlaneseq
    %v522 = vshrl.u32 %v521, 7
    %v523 = vadd.s32 %v522, 16
    %524 = vset.pattern.permute.xlu0 %v523
    %525 = vperm.xlu0 %524, %v508
    %v526 = vpop.permute.xlu0 %525
    %v527 = vlaneseq
    %v528 = vshrl.u32 %v527, 7
    %v529 = vadd.s32 %v528, 24
    %530 = vset.pattern.permute.xlu0 %v529
    %531 = vperm.xlu0 %530, %v508
    %v532 = vpop.permute.xlu0 %531
    %v533 = vlaneseq
    %v534 = vshrl.u32 %v533, 7
    %v535 = vadd.s32 %v534, 32
    %536 = vset.pattern.permute.xlu0 %v535
    %537 = vperm.xlu0 %536, %v508
    %v538 = vpop.permute.xlu0 %537
    %v539 = vlaneseq
    %v540 = vshrl.u32 %v539, 7
    %v541 = vadd.s32 %v540, 40
    %542 = vset.pattern.permute.xlu0 %v541
    %543 = vperm.xlu0 %542, %v508
    %v544 = vpop.permute.xlu0 %543
    %v545 = vlaneseq
    %v546 = vshrl.u32 %v545, 7
    %v547 = vadd.s32 %v546, 48
    %548 = vset.pattern.permute.xlu0 %v547
    %549 = vperm.xlu0 %548, %v508
    %v550 = vpop.permute.xlu0 %549
    %v551 = vlaneseq
    %v552 = vshrl.u32 %v551, 7
    %v553 = vadd.s32 %v552, 56
    %554 = vset.pattern.permute.xlu0 %v553
    %555 = vperm.xlu0 %554, %v508
    %v556 = vpop.permute.xlu0 %555
    %v557 = vlaneseq
    %v558 = vshrl.u32 %v557, 7
    %v559 = vadd.s32 %v558, 64
    %560 = vset.pattern.permute.xlu0 %v559
    %561 = vperm.xlu0 %560, %v508
    %v562 = vpop.permute.xlu0 %561
    %v563 = vlaneseq
    %v564 = vshrl.u32 %v563, 7
    %v565 = vadd.s32 %v564, 72
    %566 = vset.pattern.permute.xlu0 %v565
    %567 = vperm.xlu0 %566, %v508
    %v568 = vpop.permute.xlu0 %567
    %v569 = vlaneseq
    %v570 = vshrl.u32 %v569, 7
    %v571 = vadd.s32 %v570, 80
    %572 = vset.pattern.permute.xlu0 %v571
    %573 = vperm.xlu0 %572, %v508
    %v574 = vpop.permute.xlu0 %573
    %v575 = vlaneseq
    %v576 = vshrl.u32 %v575, 7
    %v577 = vadd.s32 %v576, 88
    %578 = vset.pattern.permute.xlu0 %v577
    %579 = vperm.xlu0 %578, %v508
    %v580 = vpop.permute.xlu0 %579
    %v581 = vlaneseq
    %v582 = vshrl.u32 %v581, 7
    %v583 = vadd.s32 %v582, 96
    %584 = vset.pattern.permute.xlu0 %v583
    %585 = vperm.xlu0 %584, %v508
    %v586 = vpop.permute.xlu0 %585
    %v587 = vlaneseq
    %v588 = vshrl.u32 %v587, 7
    %v589 = vadd.s32 %v588, 104
    %590 = vset.pattern.permute.xlu0 %v589
    %591 = vperm.xlu0 %590, %v508
    %v592 = vpop.permute.xlu0 %591
    %v593 = vlaneseq
    %v594 = vshrl.u32 %v593, 7
    %v595 = vadd.s32 %v594, 112
    %596 = vset.pattern.permute.xlu0 %v595
    %597 = vperm.xlu0 %596, %v508
    %v598 = vpop.permute.xlu0 %597
    %v599 = vlaneseq
    %v600 = vshrl.u32 %v599, 7
    %v601 = vadd.s32 %v600, 120
    %602 = vset.pattern.permute.xlu0 %v601
    %603 = vperm.xlu0 %602, %v508
    %v604 = vpop.permute.xlu0 %603
    %v605 = vperm.slane %v22, 6
    %v606 = vlaneseq
    %v607 = vshrl.u32 %v606, 7
    %609 = vset.pattern.permute.xlu0 %v607
    %610 = vperm.xlu0 %609, %v605
    %v611 = vpop.permute.xlu0 %610
    %v612 = vlaneseq
    %v613 = vshrl.u32 %v612, 7
    %v614 = vadd.s32 %v613, 8
    %615 = vset.pattern.permute.xlu0 %v614
    %616 = vperm.xlu0 %615, %v605
    %v617 = vpop.permute.xlu0 %616
    %v618 = vlaneseq
    %v619 = vshrl.u32 %v618, 7
    %v620 = vadd.s32 %v619, 16
    %621 = vset.pattern.permute.xlu0 %v620
    %622 = vperm.xlu0 %621, %v605
    %v623 = vpop.permute.xlu0 %622
    %v624 = vlaneseq
    %v625 = vshrl.u32 %v624, 7
    %v626 = vadd.s32 %v625, 24
    %627 = vset.pattern.permute.xlu0 %v626
    %628 = vperm.xlu0 %627, %v605
    %v629 = vpop.permute.xlu0 %628
    %v630 = vlaneseq
    %v631 = vshrl.u32 %v630, 7
    %v632 = vadd.s32 %v631, 32
    %633 = vset.pattern.permute.xlu0 %v632
    %634 = vperm.xlu0 %633, %v605
    %v635 = vpop.permute.xlu0 %634
    %v636 = vlaneseq
    %v637 = vshrl.u32 %v636, 7
    %v638 = vadd.s32 %v637, 40
    %639 = vset.pattern.permute.xlu0 %v638
    %640 = vperm.xlu0 %639, %v605
    %v641 = vpop.permute.xlu0 %640
    %v642 = vlaneseq
    %v643 = vshrl.u32 %v642, 7
    %v644 = vadd.s32 %v643, 48
    %645 = vset.pattern.permute.xlu0 %v644
    %646 = vperm.xlu0 %645, %v605
    %v647 = vpop.permute.xlu0 %646
    %v648 = vlaneseq
    %v649 = vshrl.u32 %v648, 7
    %v650 = vadd.s32 %v649, 56
    %651 = vset.pattern.permute.xlu0 %v650
    %652 = vperm.xlu0 %651, %v605
    %v653 = vpop.permute.xlu0 %652
    %v654 = vlaneseq
    %v655 = vshrl.u32 %v654, 7
    %v656 = vadd.s32 %v655, 64
    %657 = vset.pattern.permute.xlu0 %v656
    %658 = vperm.xlu0 %657, %v605
    %v659 = vpop.permute.xlu0 %658
    %v660 = vlaneseq
    %v661 = vshrl.u32 %v660, 7
    %v662 = vadd.s32 %v661, 72
    %663 = vset.pattern.permute.xlu0 %v662
    %664 = vperm.xlu0 %663, %v605
    %v665 = vpop.permute.xlu0 %664
    %v666 = vlaneseq
    %v667 = vshrl.u32 %v666, 7
    %v668 = vadd.s32 %v667, 80
    %669 = vset.pattern.permute.xlu0 %v668
    %670 = vperm.xlu0 %669, %v605
    %v671 = vpop.permute.xlu0 %670
    %v672 = vlaneseq
    %v673 = vshrl.u32 %v672, 7
    %v674 = vadd.s32 %v673, 88
    %675 = vset.pattern.permute.xlu0 %v674
    %676 = vperm.xlu0 %675, %v605
    %v677 = vpop.permute.xlu0 %676
    %v678 = vlaneseq
    %v679 = vshrl.u32 %v678, 7
    %v680 = vadd.s32 %v679, 96
    %681 = vset.pattern.permute.xlu0 %v680
    %682 = vperm.xlu0 %681, %v605
    %v683 = vpop.permute.xlu0 %682
    %v684 = vlaneseq
    %v685 = vshrl.u32 %v684, 7
    %v686 = vadd.s32 %v685, 104
    %687 = vset.pattern.permute.xlu0 %v686
    %688 = vperm.xlu0 %687, %v605
    %v689 = vpop.permute.xlu0 %688
    %v690 = vlaneseq
    %v691 = vshrl.u32 %v690, 7
    %v692 = vadd.s32 %v691, 112
    %693 = vset.pattern.permute.xlu0 %v692
    %694 = vperm.xlu0 %693, %v605
    %v695 = vpop.permute.xlu0 %694
    %v696 = vlaneseq
    %v697 = vshrl.u32 %v696, 7
    %v698 = vadd.s32 %v697, 120
    %699 = vset.pattern.permute.xlu0 %v698
    %700 = vperm.xlu0 %699, %v605
    %v701 = vpop.permute.xlu0 %700
    %v702 = vperm.slane %v22, 7
    %v703 = vlaneseq
    %v704 = vshrl.u32 %v703, 7
    %706 = vset.pattern.permute.xlu0 %v704
    %707 = vperm.xlu0 %706, %v702
    %v708 = vpop.permute.xlu0 %707
    %v709 = vlaneseq
    %v710 = vshrl.u32 %v709, 7
    %v711 = vadd.s32 %v710, 8
    %712 = vset.pattern.permute.xlu0 %v711
    %713 = vperm.xlu0 %712, %v702
    %v714 = vpop.permute.xlu0 %713
    %v715 = vlaneseq
    %v716 = vshrl.u32 %v715, 7
    %v717 = vadd.s32 %v716, 16
    %718 = vset.pattern.permute.xlu0 %v717
    %719 = vperm.xlu0 %718, %v702
    %v720 = vpop.permute.xlu0 %719
    %v721 = vlaneseq
    %v722 = vshrl.u32 %v721, 7
    %v723 = vadd.s32 %v722, 24
    %724 = vset.pattern.permute.xlu0 %v723
    %725 = vperm.xlu0 %724, %v702
    %v726 = vpop.permute.xlu0 %725
    %v727 = vlaneseq
    %v728 = vshrl.u32 %v727, 7
    %v729 = vadd.s32 %v728, 32
    %730 = vset.pattern.permute.xlu0 %v729
    %731 = vperm.xlu0 %730, %v702
    %v732 = vpop.permute.xlu0 %731
    %v733 = vlaneseq
    %v734 = vshrl.u32 %v733, 7
    %v735 = vadd.s32 %v734, 40
    %736 = vset.pattern.permute.xlu0 %v735
    %737 = vperm.xlu0 %736, %v702
    %v738 = vpop.permute.xlu0 %737
    %v739 = vlaneseq
    %v740 = vshrl.u32 %v739, 7
    %v741 = vadd.s32 %v740, 48
    %742 = vset.pattern.permute.xlu0 %v741
    %743 = vperm.xlu0 %742, %v702
    %v744 = vpop.permute.xlu0 %743
    %v745 = vlaneseq
    %v746 = vshrl.u32 %v745, 7
    %v747 = vadd.s32 %v746, 56
    %748 = vset.pattern.permute.xlu0 %v747
    %749 = vperm.xlu0 %748, %v702
    %v750 = vpop.permute.xlu0 %749
    %v751 = vlaneseq
    %v752 = vshrl.u32 %v751, 7
    %v753 = vadd.s32 %v752, 64
    %754 = vset.pattern.permute.xlu0 %v753
    %755 = vperm.xlu0 %754, %v702
    %v756 = vpop.permute.xlu0 %755
    %v757 = vlaneseq
    %v758 = vshrl.u32 %v757, 7
    %v759 = vadd.s32 %v758, 72
    %760 = vset.pattern.permute.xlu0 %v759
    %761 = vperm.xlu0 %760, %v702
    %v762 = vpop.permute.xlu0 %761
    %v763 = vlaneseq
    %v764 = vshrl.u32 %v763, 7
    %v765 = vadd.s32 %v764, 80
    %766 = vset.pattern.permute.xlu0 %v765
    %767 = vperm.xlu0 %766, %v702
    %v768 = vpop.permute.xlu0 %767
    %v769 = vlaneseq
    %v770 = vshrl.u32 %v769, 7
    %v771 = vadd.s32 %v770, 88
    %772 = vset.pattern.permute.xlu0 %v771
    %773 = vperm.xlu0 %772, %v702
    %v774 = vpop.permute.xlu0 %773
    %v775 = vlaneseq
    %v776 = vshrl.u32 %v775, 7
    %v777 = vadd.s32 %v776, 96
    %778 = vset.pattern.permute.xlu0 %v777
    %779 = vperm.xlu0 %778, %v702
    %v780 = vpop.permute.xlu0 %779
    %v781 = vlaneseq
    %v782 = vshrl.u32 %v781, 7
    %v783 = vadd.s32 %v782, 104
    %784 = vset.pattern.permute.xlu0 %v783
    %785 = vperm.xlu0 %784, %v702
    %v786 = vpop.permute.xlu0 %785
    %v787 = vlaneseq
    %v788 = vshrl.u32 %v787, 7
    %v789 = vadd.s32 %v788, 112
    %790 = vset.pattern.permute.xlu0 %v789
    %791 = vperm.xlu0 %790, %v702
    %v792 = vpop.permute.xlu0 %791
    %v793 = vlaneseq
    %v794 = vshrl.u32 %v793, 7
    %v795 = vadd.s32 %v794, 120
    %796 = vset.pattern.permute.xlu0 %v795
    %797 = vperm.xlu0 %796, %v702
    %v798 = vpop.permute.xlu0 %797
    %v799 = vlaneseq
    %v800 = vand.u32 %v799, 127
    %vm801 = vcmp.eq.s32.totalorder %v800, %v29
    %vm802 = vcmp.eq.s32.totalorder %v800, %v35
    %vm803 = vcmp.eq.s32.totalorder %v800, %v41
    %vm804 = vcmp.eq.s32.totalorder %v800, %v47
    %vm805 = vcmp.eq.s32.totalorder %v800, %v53
    %vm806 = vcmp.eq.s32.totalorder %v800, %v59
    %vm807 = vcmp.eq.s32.totalorder %v800, %v65
    %vm808 = vcmp.eq.s32.totalorder %v800, %v71
    %vm809 = vcmp.eq.s32.totalorder %v800, %v77
    %vm810 = vcmp.eq.s32.totalorder %v800, %v83
    %vm811 = vcmp.eq.s32.totalorder %v800, %v89
    %vm812 = vcmp.eq.s32.totalorder %v800, %v95
    %vm813 = vcmp.eq.s32.totalorder %v800, %v101
    %vm814 = vcmp.eq.s32.totalorder %v800, %v107
    %vm815 = vcmp.eq.s32.totalorder %v800, %v113
    %vm816 = vcmp.eq.s32.totalorder %v800, %v119
    %vm817 = vcmp.eq.s32.totalorder %v800, %v126
    %vm818 = vcmp.eq.s32.totalorder %v800, %v132
    %vm819 = vcmp.eq.s32.totalorder %v800, %v138
    %vm820 = vcmp.eq.s32.totalorder %v800, %v144
    %vm821 = vcmp.eq.s32.totalorder %v800, %v150
    %vm822 = vcmp.eq.s32.totalorder %v800, %v156
    %vm823 = vcmp.eq.s32.totalorder %v800, %v162
    %vm824 = vcmp.eq.s32.totalorder %v800, %v168
    %vm825 = vcmp.eq.s32.totalorder %v800, %v174
    %vm826 = vcmp.eq.s32.totalorder %v800, %v180
    %vm827 = vcmp.eq.s32.totalorder %v800, %v186
    %vm828 = vcmp.eq.s32.totalorder %v800, %v192
    %vm829 = vcmp.eq.s32.totalorder %v800, %v198
    %vm830 = vcmp.eq.s32.totalorder %v800, %v204
    %vm831 = vcmp.eq.s32.totalorder %v800, %v210
    %vm832 = vcmp.eq.s32.totalorder %v800, %v216
    %vm833 = vcmp.eq.s32.totalorder %v800, %v223
    %vm834 = vcmp.eq.s32.totalorder %v800, %v229
    %vm835 = vcmp.eq.s32.totalorder %v800, %v235
    %vm836 = vcmp.eq.s32.totalorder %v800, %v241
    %vm837 = vcmp.eq.s32.totalorder %v800, %v247
    %vm838 = vcmp.eq.s32.totalorder %v800, %v253
    %vm839 = vcmp.eq.s32.totalorder %v800, %v259
    %vm840 = vcmp.eq.s32.totalorder %v800, %v265
    %vm841 = vcmp.eq.s32.totalorder %v800, %v271
    %vm842 = vcmp.eq.s32.totalorder %v800, %v277
    %vm843 = vcmp.eq.s32.totalorder %v800, %v283
    %vm844 = vcmp.eq.s32.totalorder %v800, %v289
    %vm845 = vcmp.eq.s32.totalorder %v800, %v295
    %vm846 = vcmp.eq.s32.totalorder %v800, %v301
    %vm847 = vcmp.eq.s32.totalorder %v800, %v307
    %vm848 = vcmp.eq.s32.totalorder %v800, %v313
    %vm849 = vcmp.eq.s32.totalorder %v800, %v320
    %vm850 = vcmp.eq.s32.totalorder %v800, %v326
    %vm851 = vcmp.eq.s32.totalorder %v800, %v332
    %vm852 = vcmp.eq.s32.totalorder %v800, %v338
    %vm853 = vcmp.eq.s32.totalorder %v800, %v344
    %vm854 = vcmp.eq.s32.totalorder %v800, %v350
    %vm855 = vcmp.eq.s32.totalorder %v800, %v356
    %vm856 = vcmp.eq.s32.totalorder %v800, %v362
    %vm857 = vcmp.eq.s32.totalorder %v800, %v368
    %vm858 = vcmp.eq.s32.totalorder %v800, %v374
    %vm859 = vcmp.eq.s32.totalorder %v800, %v380
    %vm860 = vcmp.eq.s32.totalorder %v800, %v386
    %vm861 = vcmp.eq.s32.totalorder %v800, %v392
    %vm862 = vcmp.eq.s32.totalorder %v800, %v398
    %vm863 = vcmp.eq.s32.totalorder %v800, %v404
    %vm864 = vcmp.eq.s32.totalorder %v800, %v410
    %vm865 = vcmp.eq.s32.totalorder %v800, %v417
    %vm866 = vcmp.eq.s32.totalorder %v800, %v423
    %vm867 = vcmp.eq.s32.totalorder %v800, %v429
    %vm868 = vcmp.eq.s32.totalorder %v800, %v435
    %vm869 = vcmp.eq.s32.totalorder %v800, %v441
    %vm870 = vcmp.eq.s32.totalorder %v800, %v447
    %vm871 = vcmp.eq.s32.totalorder %v800, %v453
    %vm872 = vcmp.eq.s32.totalorder %v800, %v459
    %vm873 = vcmp.eq.s32.totalorder %v800, %v465
    %vm874 = vcmp.eq.s32.totalorder %v800, %v471
    %vm875 = vcmp.eq.s32.totalorder %v800, %v477
    %vm876 = vcmp.eq.s32.totalorder %v800, %v483
    %vm877 = vcmp.eq.s32.totalorder %v800, %v489
    %vm878 = vcmp.eq.s32.totalorder %v800, %v495
    %vm879 = vcmp.eq.s32.totalorder %v800, %v501
    %vm880 = vcmp.eq.s32.totalorder %v800, %v507
    %vm881 = vcmp.eq.s32.totalorder %v800, %v514
    %vm882 = vcmp.eq.s32.totalorder %v800, %v520
    %vm883 = vcmp.eq.s32.totalorder %v800, %v526
    %vm884 = vcmp.eq.s32.totalorder %v800, %v532
    %vm885 = vcmp.eq.s32.totalorder %v800, %v538
    %vm886 = vcmp.eq.s32.totalorder %v800, %v544
    %vm887 = vcmp.eq.s32.totalorder %v800, %v550
    %vm888 = vcmp.eq.s32.totalorder %v800, %v556
    %vm889 = vcmp.eq.s32.totalorder %v800, %v562
    %vm890 = vcmp.eq.s32.totalorder %v800, %v568
    %vm891 = vcmp.eq.s32.totalorder %v800, %v574
    %vm892 = vcmp.eq.s32.totalorder %v800, %v580
    %vm893 = vcmp.eq.s32.totalorder %v800, %v586
    %vm894 = vcmp.eq.s32.totalorder %v800, %v592
    %vm895 = vcmp.eq.s32.totalorder %v800, %v598
    %vm896 = vcmp.eq.s32.totalorder %v800, %v604
    %vm897 = vcmp.eq.s32.totalorder %v800, %v611
    %vm898 = vcmp.eq.s32.totalorder %v800, %v617
    %vm899 = vcmp.eq.s32.totalorder %v800, %v623
    %vm900 = vcmp.eq.s32.totalorder %v800, %v629
    %vm901 = vcmp.eq.s32.totalorder %v800, %v635
    %vm902 = vcmp.eq.s32.totalorder %v800, %v641
    %vm903 = vcmp.eq.s32.totalorder %v800, %v647
    %vm904 = vcmp.eq.s32.totalorder %v800, %v653
    %vm905 = vcmp.eq.s32.totalorder %v800, %v659
    %vm906 = vcmp.eq.s32.totalorder %v800, %v665
    %vm907 = vcmp.eq.s32.totalorder %v800, %v671
    %vm908 = vcmp.eq.s32.totalorder %v800, %v677
    %vm909 = vcmp.eq.s32.totalorder %v800, %v683
    %vm910 = vcmp.eq.s32.totalorder %v800, %v689
    %vm911 = vcmp.eq.s32.totalorder %v800, %v695
    %vm912 = vcmp.eq.s32.totalorder %v800, %v701
    %vm913 = vcmp.eq.s32.totalorder %v800, %v708
    %vm914 = vcmp.eq.s32.totalorder %v800, %v714
    %vm915 = vcmp.eq.s32.totalorder %v800, %v720
    %vm916 = vcmp.eq.s32.totalorder %v800, %v726
    %vm917 = vcmp.eq.s32.totalorder %v800, %v732
    %vm918 = vcmp.eq.s32.totalorder %v800, %v738
    %vm919 = vcmp.eq.s32.totalorder %v800, %v744
    %vm920 = vcmp.eq.s32.totalorder %v800, %v750
    %vm921 = vcmp.eq.s32.totalorder %v800, %v756
    %vm922 = vcmp.eq.s32.totalorder %v800, %v762
    %vm923 = vcmp.eq.s32.totalorder %v800, %v768
    %vm924 = vcmp.eq.s32.totalorder %v800, %v774
    %vm925 = vcmp.eq.s32.totalorder %v800, %v780
    %vm926 = vcmp.eq.s32.totalorder %v800, %v786
    %vm927 = vcmp.eq.s32.totalorder %v800, %v792
    %vm928 = vcmp.eq.s32.totalorder %v800, %v798
    %vm929 = vcmp.ne.s32.totalorder %v29, 0
    %vm930 = vcmp.ne.s32.totalorder %v35, 0
    %vm931 = vcmp.ne.s32.totalorder %v41, 0
    %vm932 = vcmp.ne.s32.totalorder %v47, 0
    %vm933 = vcmp.ne.s32.totalorder %v53, 0
    %vm934 = vcmp.ne.s32.totalorder %v59, 0
    %vm935 = vcmp.ne.s32.totalorder %v65, 0
    %vm936 = vcmp.ne.s32.totalorder %v71, 0
    %vm937 = vcmp.ne.s32.totalorder %v77, 0
    %vm938 = vcmp.ne.s32.totalorder %v83, 0
    %vm939 = vcmp.ne.s32.totalorder %v89, 0
    %vm940 = vcmp.ne.s32.totalorder %v95, 0
    %vm941 = vcmp.ne.s32.totalorder %v101, 0
    %vm942 = vcmp.ne.s32.totalorder %v107, 0
    %vm943 = vcmp.ne.s32.totalorder %v113, 0
    %vm944 = vcmp.ne.s32.totalorder %v119, 0
    %vm945 = vcmp.ne.s32.totalorder %v126, 0
    %vm946 = vcmp.ne.s32.totalorder %v132, 0
    %vm947 = vcmp.ne.s32.totalorder %v138, 0
    %vm948 = vcmp.ne.s32.totalorder %v144, 0
    %vm949 = vcmp.ne.s32.totalorder %v150, 0
    %vm950 = vcmp.ne.s32.totalorder %v156, 0
    %vm951 = vcmp.ne.s32.totalorder %v162, 0
    %vm952 = vcmp.ne.s32.totalorder %v168, 0
    %vm953 = vcmp.ne.s32.totalorder %v174, 0
    %vm954 = vcmp.ne.s32.totalorder %v180, 0
    %vm955 = vcmp.ne.s32.totalorder %v186, 0
    %vm956 = vcmp.ne.s32.totalorder %v192, 0
    %vm957 = vcmp.ne.s32.totalorder %v198, 0
    %vm958 = vcmp.ne.s32.totalorder %v204, 0
    %vm959 = vcmp.ne.s32.totalorder %v210, 0
    %vm960 = vcmp.ne.s32.totalorder %v216, 0
    %vm961 = vcmp.ne.s32.totalorder %v223, 0
    %vm962 = vcmp.ne.s32.totalorder %v229, 0
    %vm963 = vcmp.ne.s32.totalorder %v235, 0
    %vm964 = vcmp.ne.s32.totalorder %v241, 0
    %vm965 = vcmp.ne.s32.totalorder %v247, 0
    %vm966 = vcmp.ne.s32.totalorder %v253, 0
    %vm967 = vcmp.ne.s32.totalorder %v259, 0
    %vm968 = vcmp.ne.s32.totalorder %v265, 0
    %vm969 = vcmp.ne.s32.totalorder %v271, 0
    %vm970 = vcmp.ne.s32.totalorder %v277, 0
    %vm971 = vcmp.ne.s32.totalorder %v283, 0
    %vm972 = vcmp.ne.s32.totalorder %v289, 0
    %vm973 = vcmp.ne.s32.totalorder %v295, 0
    %vm974 = vcmp.ne.s32.totalorder %v301, 0
    %vm975 = vcmp.ne.s32.totalorder %v307, 0
    %vm976 = vcmp.ne.s32.totalorder %v313, 0
    %vm977 = vcmp.ne.s32.totalorder %v320, 0
    %vm978 = vcmp.ne.s32.totalorder %v326, 0
    %vm979 = vcmp.ne.s32.totalorder %v332, 0
    %vm980 = vcmp.ne.s32.totalorder %v338, 0
    %vm981 = vcmp.ne.s32.totalorder %v344, 0
    %vm982 = vcmp.ne.s32.totalorder %v350, 0
    %vm983 = vcmp.ne.s32.totalorder %v356, 0
    %vm984 = vcmp.ne.s32.totalorder %v362, 0
    %vm985 = vcmp.ne.s32.totalorder %v368, 0
    %vm986 = vcmp.ne.s32.totalorder %v374, 0
    %vm987 = vcmp.ne.s32.totalorder %v380, 0
    %vm988 = vcmp.ne.s32.totalorder %v386, 0
    %vm989 = vcmp.ne.s32.totalorder %v392, 0
    %vm990 = vcmp.ne.s32.totalorder %v398, 0
    %vm991 = vcmp.ne.s32.totalorder %v404, 0
    %vm992 = vcmp.ne.s32.totalorder %v410, 0
    %vm993 = vcmp.ne.s32.totalorder %v417, 0
    %vm994 = vcmp.ne.s32.totalorder %v423, 0
    %vm995 = vcmp.ne.s32.totalorder %v429, 0
    %vm996 = vcmp.ne.s32.totalorder %v435, 0
    %vm997 = vcmp.ne.s32.totalorder %v441, 0
    %vm998 = vcmp.ne.s32.totalorder %v447, 0
    %vm999 = vcmp.ne.s32.totalorder %v453, 0
    %vm1000 = vcmp.ne.s32.totalorder %v459, 0
    %vm1001 = vcmp.ne.s32.totalorder %v465, 0
    %vm1002 = vcmp.ne.s32.totalorder %v471, 0
    %vm1003 = vcmp.ne.s32.totalorder %v477, 0
    %vm1004 = vcmp.ne.s32.totalorder %v483, 0
    %vm1005 = vcmp.ne.s32.totalorder %v489, 0
    %vm1006 = vcmp.ne.s32.totalorder %v495, 0
    %vm1007 = vcmp.ne.s32.totalorder %v501, 0
    %vm1008 = vcmp.ne.s32.totalorder %v507, 0
    %vm1009 = vcmp.ne.s32.totalorder %v514, 0
    %vm1010 = vcmp.ne.s32.totalorder %v520, 0
    %vm1011 = vcmp.ne.s32.totalorder %v526, 0
    %vm1012 = vcmp.ne.s32.totalorder %v532, 0
    %vm1013 = vcmp.ne.s32.totalorder %v538, 0
    %vm1014 = vcmp.ne.s32.totalorder %v544, 0
    %vm1015 = vcmp.ne.s32.totalorder %v550, 0
    %vm1016 = vcmp.ne.s32.totalorder %v556, 0
    %vm1017 = vcmp.ne.s32.totalorder %v562, 0
    %vm1018 = vcmp.ne.s32.totalorder %v568, 0
    %vm1019 = vcmp.ne.s32.totalorder %v574, 0
    %vm1020 = vcmp.ne.s32.totalorder %v580, 0
    %vm1021 = vcmp.ne.s32.totalorder %v586, 0
    %vm1022 = vcmp.ne.s32.totalorder %v592, 0
    %vm1023 = vcmp.ne.s32.totalorder %v598, 0
    %vm1024 = vcmp.ne.s32.totalorder %v604, 0
    %vm1025 = vcmp.ne.s32.totalorder %v611, 0
    %vm1026 = vcmp.ne.s32.totalorder %v617, 0
    %vm1027 = vcmp.ne.s32.totalorder %v623, 0
    %vm1028 = vcmp.ne.s32.totalorder %v629, 0
    %vm1029 = vcmp.ne.s32.totalorder %v635, 0
    %vm1030 = vcmp.ne.s32.totalorder %v641, 0
    %vm1031 = vcmp.ne.s32.totalorder %v647, 0
    %vm1032 = vcmp.ne.s32.totalorder %v653, 0
    %vm1033 = vcmp.ne.s32.totalorder %v659, 0
    %vm1034 = vcmp.ne.s32.totalorder %v665, 0
    %vm1035 = vcmp.ne.s32.totalorder %v671, 0
    %vm1036 = vcmp.ne.s32.totalorder %v677, 0
    %vm1037 = vcmp.ne.s32.totalorder %v683, 0
    %vm1038 = vcmp.ne.s32.totalorder %v689, 0
    %vm1039 = vcmp.ne.s32.totalorder %v695, 0
    %vm1040 = vcmp.ne.s32.totalorder %v701, 0
    %vm1041 = vcmp.ne.s32.totalorder %v708, 0
    %vm1042 = vcmp.ne.s32.totalorder %v714, 0
    %vm1043 = vcmp.ne.s32.totalorder %v720, 0
    %vm1044 = vcmp.ne.s32.totalorder %v726, 0
    %vm1045 = vcmp.ne.s32.totalorder %v732, 0
    %vm1046 = vcmp.ne.s32.totalorder %v738, 0
    %vm1047 = vcmp.ne.s32.totalorder %v744, 0
    %vm1048 = vcmp.ne.s32.totalorder %v750, 0
    %vm1049 = vcmp.ne.s32.totalorder %v756, 0
    %vm1050 = vcmp.ne.s32.totalorder %v762, 0
    %vm1051 = vcmp.ne.s32.totalorder %v768, 0
    %vm1052 = vcmp.ne.s32.totalorder %v774, 0
    %vm1053 = vcmp.ne.s32.totalorder %v780, 0
    %vm1054 = vcmp.ne.s32.totalorder %v786, 0
    %vm1055 = vcmp.ne.s32.totalorder %v792, 0
    %vm1056 = vcmp.ne.s32.totalorder %v798, 0
    %v1057 = vsel %vm929, 1, 0
    %v1058 = vsel %vm930, 1, 0
    %v1059 = vsel %vm931, 1, 0
    %v1060 = vsel %vm932, 1, 0
    %v1061 = vsel %vm933, 1, 0
    %v1062 = vsel %vm934, 1, 0
    %v1063 = vsel %vm935, 1, 0
    %v1064 = vsel %vm936, 1, 0
    %v1065 = vsel %vm937, 1, 0
    %v1066 = vsel %vm938, 1, 0
    %v1067 = vsel %vm939, 1, 0
    %v1068 = vsel %vm940, 1, 0
    %v1069 = vsel %vm941, 1, 0
    %v1070 = vsel %vm942, 1, 0
    %v1071 = vsel %vm943, 1, 0
    %v1072 = vsel %vm944, 1, 0
    %v1073 = vsel %vm945, 1, 0
    %v1074 = vsel %vm946, 1, 0
    %v1075 = vsel %vm947, 1, 0
    %v1076 = vsel %vm948, 1, 0
    %v1077 = vsel %vm949, 1, 0
    %v1078 = vsel %vm950, 1, 0
    %v1079 = vsel %vm951, 1, 0
    %v1080 = vsel %vm952, 1, 0
    %v1081 = vsel %vm953, 1, 0
    %v1082 = vsel %vm954, 1, 0
    %v1083 = vsel %vm955, 1, 0
    %v1084 = vsel %vm956, 1, 0
    %v1085 = vsel %vm957, 1, 0
    %v1086 = vsel %vm958, 1, 0
    %v1087 = vsel %vm959, 1, 0
    %v1088 = vsel %vm960, 1, 0
    %v1089 = vsel %vm961, 1, 0
    %v1090 = vsel %vm962, 1, 0
    %v1091 = vsel %vm963, 1, 0
    %v1092 = vsel %vm964, 1, 0
    %v1093 = vsel %vm965, 1, 0
    %v1094 = vsel %vm966, 1, 0
    %v1095 = vsel %vm967, 1, 0
    %v1096 = vsel %vm968, 1, 0
    %v1097 = vsel %vm969, 1, 0
    %v1098 = vsel %vm970, 1, 0
    %v1099 = vsel %vm971, 1, 0
    %v1100 = vsel %vm972, 1, 0
    %v1101 = vsel %vm973, 1, 0
    %v1102 = vsel %vm974, 1, 0
    %v1103 = vsel %vm975, 1, 0
    %v1104 = vsel %vm976, 1, 0
    %v1105 = vsel %vm977, 1, 0
    %v1106 = vsel %vm978, 1, 0
    %v1107 = vsel %vm979, 1, 0
    %v1108 = vsel %vm980, 1, 0
    %v1109 = vsel %vm981, 1, 0
    %v1110 = vsel %vm982, 1, 0
    %v1111 = vsel %vm983, 1, 0
    %v1112 = vsel %vm984, 1, 0
    %v1113 = vsel %vm985, 1, 0
    %v1114 = vsel %vm986, 1, 0
    %v1115 = vsel %vm987, 1, 0
    %v1116 = vsel %vm988, 1, 0
    %v1117 = vsel %vm989, 1, 0
    %v1118 = vsel %vm990, 1, 0
    %v1119 = vsel %vm991, 1, 0
    %v1120 = vsel %vm992, 1, 0
    %v1121 = vsel %vm993, 1, 0
    %v1122 = vsel %vm994, 1, 0
    %v1123 = vsel %vm995, 1, 0
    %v1124 = vsel %vm996, 1, 0
    %v1125 = vsel %vm997, 1, 0
    %v1126 = vsel %vm998, 1, 0
    %v1127 = vsel %vm999, 1, 0
    %v1128 = vsel %vm1000, 1, 0
    %v1129 = vsel %vm1001, 1, 0
    %v1130 = vsel %vm1002, 1, 0
    %v1131 = vsel %vm1003, 1, 0
    %v1132 = vsel %vm1004, 1, 0
    %v1133 = vsel %vm1005, 1, 0
    %v1134 = vsel %vm1006, 1, 0
    %v1135 = vsel %vm1007, 1, 0
    %v1136 = vsel %vm1008, 1, 0
    %v1137 = vsel %vm1009, 1, 0
    %v1138 = vsel %vm1010, 1, 0
    %v1139 = vsel %vm1011, 1, 0
    %v1140 = vsel %vm1012, 1, 0
    %v1141 = vsel %vm1013, 1, 0
    %v1142 = vsel %vm1014, 1, 0
    %v1143 = vsel %vm1015, 1, 0
    %v1144 = vsel %vm1016, 1, 0
    %v1145 = vsel %vm1017, 1, 0
    %v1146 = vsel %vm1018, 1, 0
    %v1147 = vsel %vm1019, 1, 0
    %v1148 = vsel %vm1020, 1, 0
    %v1149 = vsel %vm1021, 1, 0
    %v1150 = vsel %vm1022, 1, 0
    %v1151 = vsel %vm1023, 1, 0
    %v1152 = vsel %vm1024, 1, 0
    %v1153 = vsel %vm1025, 1, 0
    %v1154 = vsel %vm1026, 1, 0
    %v1155 = vsel %vm1027, 1, 0
    %v1156 = vsel %vm1028, 1, 0
    %v1157 = vsel %vm1029, 1, 0
    %v1158 = vsel %vm1030, 1, 0
    %v1159 = vsel %vm1031, 1, 0
    %v1160 = vsel %vm1032, 1, 0
    %v1161 = vsel %vm1033, 1, 0
    %v1162 = vsel %vm1034, 1, 0
    %v1163 = vsel %vm1035, 1, 0
    %v1164 = vsel %vm1036, 1, 0
    %v1165 = vsel %vm1037, 1, 0
    %v1166 = vsel %vm1038, 1, 0
    %v1167 = vsel %vm1039, 1, 0
    %v1168 = vsel %vm1040, 1, 0
    %v1169 = vsel %vm1041, 1, 0
    %v1170 = vsel %vm1042, 1, 0
    %v1171 = vsel %vm1043, 1, 0
    %v1172 = vsel %vm1044, 1, 0
    %v1173 = vsel %vm1045, 1, 0
    %v1174 = vsel %vm1046, 1, 0
    %v1175 = vsel %vm1047, 1, 0
    %v1176 = vsel %vm1048, 1, 0
    %v1177 = vsel %vm1049, 1, 0
    %v1178 = vsel %vm1050, 1, 0
    %v1179 = vsel %vm1051, 1, 0
    %v1180 = vsel %vm1052, 1, 0
    %v1181 = vsel %vm1053, 1, 0
    %v1182 = vsel %vm1054, 1, 0
    %v1183 = vsel %vm1055, 1, 0
    %v1184 = vsel %vm1056, 1, 0
    %vm1185 = vcmp.eq.s32.totalorder %v1057, 1
    %vm1186 = vcmp.eq.s32.totalorder %v1058, 1
    %vm1187 = vcmp.eq.s32.totalorder %v1059, 1
    %vm1188 = vcmp.eq.s32.totalorder %v1060, 1
    %vm1189 = vcmp.eq.s32.totalorder %v1061, 1
    %vm1190 = vcmp.eq.s32.totalorder %v1062, 1
    %vm1191 = vcmp.eq.s32.totalorder %v1063, 1
    %vm1192 = vcmp.eq.s32.totalorder %v1064, 1
    %vm1193 = vcmp.eq.s32.totalorder %v1065, 1
    %vm1194 = vcmp.eq.s32.totalorder %v1066, 1
    %vm1195 = vcmp.eq.s32.totalorder %v1067, 1
    %vm1196 = vcmp.eq.s32.totalorder %v1068, 1
    %vm1197 = vcmp.eq.s32.totalorder %v1069, 1
    %vm1198 = vcmp.eq.s32.totalorder %v1070, 1
    %vm1199 = vcmp.eq.s32.totalorder %v1071, 1
    %vm1200 = vcmp.eq.s32.totalorder %v1072, 1
    %vm1201 = vcmp.eq.s32.totalorder %v1073, 1
    %vm1202 = vcmp.eq.s32.totalorder %v1074, 1
    %vm1203 = vcmp.eq.s32.totalorder %v1075, 1
    %vm1204 = vcmp.eq.s32.totalorder %v1076, 1
    %vm1205 = vcmp.eq.s32.totalorder %v1077, 1
    %vm1206 = vcmp.eq.s32.totalorder %v1078, 1
    %vm1207 = vcmp.eq.s32.totalorder %v1079, 1
    %vm1208 = vcmp.eq.s32.totalorder %v1080, 1
    %vm1209 = vcmp.eq.s32.totalorder %v1081, 1
    %vm1210 = vcmp.eq.s32.totalorder %v1082, 1
    %vm1211 = vcmp.eq.s32.totalorder %v1083, 1
    %vm1212 = vcmp.eq.s32.totalorder %v1084, 1
    %vm1213 = vcmp.eq.s32.totalorder %v1085, 1
    %vm1214 = vcmp.eq.s32.totalorder %v1086, 1
    %vm1215 = vcmp.eq.s32.totalorder %v1087, 1
    %vm1216 = vcmp.eq.s32.totalorder %v1088, 1
    %vm1217 = vcmp.eq.s32.totalorder %v1089, 1
    %vm1218 = vcmp.eq.s32.totalorder %v1090, 1
    %vm1219 = vcmp.eq.s32.totalorder %v1091, 1
    %vm1220 = vcmp.eq.s32.totalorder %v1092, 1
    %vm1221 = vcmp.eq.s32.totalorder %v1093, 1
    %vm1222 = vcmp.eq.s32.totalorder %v1094, 1
    %vm1223 = vcmp.eq.s32.totalorder %v1095, 1
    %vm1224 = vcmp.eq.s32.totalorder %v1096, 1
    %vm1225 = vcmp.eq.s32.totalorder %v1097, 1
    %vm1226 = vcmp.eq.s32.totalorder %v1098, 1
    %vm1227 = vcmp.eq.s32.totalorder %v1099, 1
    %vm1228 = vcmp.eq.s32.totalorder %v1100, 1
    %vm1229 = vcmp.eq.s32.totalorder %v1101, 1
    %vm1230 = vcmp.eq.s32.totalorder %v1102, 1
    %vm1231 = vcmp.eq.s32.totalorder %v1103, 1
    %vm1232 = vcmp.eq.s32.totalorder %v1104, 1
    %vm1233 = vcmp.eq.s32.totalorder %v1105, 1
    %vm1234 = vcmp.eq.s32.totalorder %v1106, 1
    %vm1235 = vcmp.eq.s32.totalorder %v1107, 1
    %vm1236 = vcmp.eq.s32.totalorder %v1108, 1
    %vm1237 = vcmp.eq.s32.totalorder %v1109, 1
    %vm1238 = vcmp.eq.s32.totalorder %v1110, 1
    %vm1239 = vcmp.eq.s32.totalorder %v1111, 1
    %vm1240 = vcmp.eq.s32.totalorder %v1112, 1
    %vm1241 = vcmp.eq.s32.totalorder %v1113, 1
    %vm1242 = vcmp.eq.s32.totalorder %v1114, 1
    %vm1243 = vcmp.eq.s32.totalorder %v1115, 1
    %vm1244 = vcmp.eq.s32.totalorder %v1116, 1
    %vm1245 = vcmp.eq.s32.totalorder %v1117, 1
    %vm1246 = vcmp.eq.s32.totalorder %v1118, 1
    %vm1247 = vcmp.eq.s32.totalorder %v1119, 1
    %vm1248 = vcmp.eq.s32.totalorder %v1120, 1
    %vm1249 = vcmp.eq.s32.totalorder %v1121, 1
    %vm1250 = vcmp.eq.s32.totalorder %v1122, 1
    %vm1251 = vcmp.eq.s32.totalorder %v1123, 1
    %vm1252 = vcmp.eq.s32.totalorder %v1124, 1
    %vm1253 = vcmp.eq.s32.totalorder %v1125, 1
    %vm1254 = vcmp.eq.s32.totalorder %v1126, 1
    %vm1255 = vcmp.eq.s32.totalorder %v1127, 1
    %vm1256 = vcmp.eq.s32.totalorder %v1128, 1
    %vm1257 = vcmp.eq.s32.totalorder %v1129, 1
    %vm1258 = vcmp.eq.s32.totalorder %v1130, 1
    %vm1259 = vcmp.eq.s32.totalorder %v1131, 1
    %vm1260 = vcmp.eq.s32.totalorder %v1132, 1
    %vm1261 = vcmp.eq.s32.totalorder %v1133, 1
    %vm1262 = vcmp.eq.s32.totalorder %v1134, 1
    %vm1263 = vcmp.eq.s32.totalorder %v1135, 1
    %vm1264 = vcmp.eq.s32.totalorder %v1136, 1
    %vm1265 = vcmp.eq.s32.totalorder %v1137, 1
    %vm1266 = vcmp.eq.s32.totalorder %v1138, 1
    %vm1267 = vcmp.eq.s32.totalorder %v1139, 1
    %vm1268 = vcmp.eq.s32.totalorder %v1140, 1
    %vm1269 = vcmp.eq.s32.totalorder %v1141, 1
    %vm1270 = vcmp.eq.s32.totalorder %v1142, 1
    %vm1271 = vcmp.eq.s32.totalorder %v1143, 1
    %vm1272 = vcmp.eq.s32.totalorder %v1144, 1
    %vm1273 = vcmp.eq.s32.totalorder %v1145, 1
    %vm1274 = vcmp.eq.s32.totalorder %v1146, 1
    %vm1275 = vcmp.eq.s32.totalorder %v1147, 1
    %vm1276 = vcmp.eq.s32.totalorder %v1148, 1
    %vm1277 = vcmp.eq.s32.totalorder %v1149, 1
    %vm1278 = vcmp.eq.s32.totalorder %v1150, 1
    %vm1279 = vcmp.eq.s32.totalorder %v1151, 1
    %vm1280 = vcmp.eq.s32.totalorder %v1152, 1
    %vm1281 = vcmp.eq.s32.totalorder %v1153, 1
    %vm1282 = vcmp.eq.s32.totalorder %v1154, 1
    %vm1283 = vcmp.eq.s32.totalorder %v1155, 1
    %vm1284 = vcmp.eq.s32.totalorder %v1156, 1
    %vm1285 = vcmp.eq.s32.totalorder %v1157, 1
    %vm1286 = vcmp.eq.s32.totalorder %v1158, 1
    %vm1287 = vcmp.eq.s32.totalorder %v1159, 1
    %vm1288 = vcmp.eq.s32.totalorder %v1160, 1
    %vm1289 = vcmp.eq.s32.totalorder %v1161, 1
    %vm1290 = vcmp.eq.s32.totalorder %v1162, 1
    %vm1291 = vcmp.eq.s32.totalorder %v1163, 1
    %vm1292 = vcmp.eq.s32.totalorder %v1164, 1
    %vm1293 = vcmp.eq.s32.totalorder %v1165, 1
    %vm1294 = vcmp.eq.s32.totalorder %v1166, 1
    %vm1295 = vcmp.eq.s32.totalorder %v1167, 1
    %vm1296 = vcmp.eq.s32.totalorder %v1168, 1
    %vm1297 = vcmp.eq.s32.totalorder %v1169, 1
    %vm1298 = vcmp.eq.s32.totalorder %v1170, 1
    %vm1299 = vcmp.eq.s32.totalorder %v1171, 1
    %vm1300 = vcmp.eq.s32.totalorder %v1172, 1
    %vm1301 = vcmp.eq.s32.totalorder %v1173, 1
    %vm1302 = vcmp.eq.s32.totalorder %v1174, 1
    %vm1303 = vcmp.eq.s32.totalorder %v1175, 1
    %vm1304 = vcmp.eq.s32.totalorder %v1176, 1
    %vm1305 = vcmp.eq.s32.totalorder %v1177, 1
    %vm1306 = vcmp.eq.s32.totalorder %v1178, 1
    %vm1307 = vcmp.eq.s32.totalorder %v1179, 1
    %vm1308 = vcmp.eq.s32.totalorder %v1180, 1
    %vm1309 = vcmp.eq.s32.totalorder %v1181, 1
    %vm1310 = vcmp.eq.s32.totalorder %v1182, 1
    %vm1311 = vcmp.eq.s32.totalorder %v1183, 1
    %vm1312 = vcmp.eq.s32.totalorder %v1184, 1
    %vm1313 = vmand %vm801, %vm1185
    %vm1314 = vmand %vm802, %vm1186
    %vm1315 = vmand %vm803, %vm1187
    %vm1316 = vmand %vm804, %vm1188
    %vm1317 = vmand %vm805, %vm1189
    %vm1318 = vmand %vm806, %vm1190
    %vm1319 = vmand %vm807, %vm1191
    %vm1320 = vmand %vm808, %vm1192
    %vm1321 = vmand %vm809, %vm1193
    %vm1322 = vmand %vm810, %vm1194
    %vm1323 = vmand %vm811, %vm1195
    %vm1324 = vmand %vm812, %vm1196
    %vm1325 = vmand %vm813, %vm1197
    %vm1326 = vmand %vm814, %vm1198
    %vm1327 = vmand %vm815, %vm1199
    %vm1328 = vmand %vm816, %vm1200
    %vm1329 = vmand %vm817, %vm1201
    %vm1330 = vmand %vm818, %vm1202
    %vm1331 = vmand %vm819, %vm1203
    %vm1332 = vmand %vm820, %vm1204
    %vm1333 = vmand %vm821, %vm1205
    %vm1334 = vmand %vm822, %vm1206
    %vm1335 = vmand %vm823, %vm1207
    %vm1336 = vmand %vm824, %vm1208
    %vm1337 = vmand %vm825, %vm1209
    %vm1338 = vmand %vm826, %vm1210
    %vm1339 = vmand %vm827, %vm1211
    %vm1340 = vmand %vm828, %vm1212
    %vm1341 = vmand %vm829, %vm1213
    %vm1342 = vmand %vm830, %vm1214
    %vm1343 = vmand %vm831, %vm1215
    %vm1344 = vmand %vm832, %vm1216
    %vm1345 = vmand %vm833, %vm1217
    %vm1346 = vmand %vm834, %vm1218
    %vm1347 = vmand %vm835, %vm1219
    %vm1348 = vmand %vm836, %vm1220
    %vm1349 = vmand %vm837, %vm1221
    %vm1350 = vmand %vm838, %vm1222
    %vm1351 = vmand %vm839, %vm1223
    %vm1352 = vmand %vm840, %vm1224
    %vm1353 = vmand %vm841, %vm1225
    %vm1354 = vmand %vm842, %vm1226
    %vm1355 = vmand %vm843, %vm1227
    %vm1356 = vmand %vm844, %vm1228
    %vm1357 = vmand %vm845, %vm1229
    %vm1358 = vmand %vm846, %vm1230
    %vm1359 = vmand %vm847, %vm1231
    %vm1360 = vmand %vm848, %vm1232
    %vm1361 = vmand %vm849, %vm1233
    %vm1362 = vmand %vm850, %vm1234
    %vm1363 = vmand %vm851, %vm1235
    %vm1364 = vmand %vm852, %vm1236
    %vm1365 = vmand %vm853, %vm1237
    %vm1366 = vmand %vm854, %vm1238
    %vm1367 = vmand %vm855, %vm1239
    %vm1368 = vmand %vm856, %vm1240
    %vm1369 = vmand %vm857, %vm1241
    %vm1370 = vmand %vm858, %vm1242
    %vm1371 = vmand %vm859, %vm1243
    %vm1372 = vmand %vm860, %vm1244
    %vm1373 = vmand %vm861, %vm1245
    %vm1374 = vmand %vm862, %vm1246
    %vm1375 = vmand %vm863, %vm1247
    %vm1376 = vmand %vm864, %vm1248
    %vm1377 = vmand %vm865, %vm1249
    %vm1378 = vmand %vm866, %vm1250
    %vm1379 = vmand %vm867, %vm1251
    %vm1380 = vmand %vm868, %vm1252
    %vm1381 = vmand %vm869, %vm1253
    %vm1382 = vmand %vm870, %vm1254
    %vm1383 = vmand %vm871, %vm1255
    %vm1384 = vmand %vm872, %vm1256
    %vm1385 = vmand %vm873, %vm1257
    %vm1386 = vmand %vm874, %vm1258
    %vm1387 = vmand %vm875, %vm1259
    %vm1388 = vmand %vm876, %vm1260
    %vm1389 = vmand %vm877, %vm1261
    %vm1390 = vmand %vm878, %vm1262
    %vm1391 = vmand %vm879, %vm1263
    %vm1392 = vmand %vm880, %vm1264
    %vm1393 = vmand %vm881, %vm1265
    %vm1394 = vmand %vm882, %vm1266
    %vm1395 = vmand %vm883, %vm1267
    %vm1396 = vmand %vm884, %vm1268
    %vm1397 = vmand %vm885, %vm1269
    %vm1398 = vmand %vm886, %vm1270
    %vm1399 = vmand %vm887, %vm1271
    %vm1400 = vmand %vm888, %vm1272
    %vm1401 = vmand %vm889, %vm1273
    %vm1402 = vmand %vm890, %vm1274
    %vm1403 = vmand %vm891, %vm1275
    %vm1404 = vmand %vm892, %vm1276
    %vm1405 = vmand %vm893, %vm1277
    %vm1406 = vmand %vm894, %vm1278
    %vm1407 = vmand %vm895, %vm1279
    %vm1408 = vmand %vm896, %vm1280
    %vm1409 = vmand %vm897, %vm1281
    %vm1410 = vmand %vm898, %vm1282
    %vm1411 = vmand %vm899, %vm1283
    %vm1412 = vmand %vm900, %vm1284
    %vm1413 = vmand %vm901, %vm1285
    %vm1414 = vmand %vm902, %vm1286
    %vm1415 = vmand %vm903, %vm1287
    %vm1416 = vmand %vm904, %vm1288
    %vm1417 = vmand %vm905, %vm1289
    %vm1418 = vmand %vm906, %vm1290
    %vm1419 = vmand %vm907, %vm1291
    %vm1420 = vmand %vm908, %vm1292
    %vm1421 = vmand %vm909, %vm1293
    %vm1422 = vmand %vm910, %vm1294
    %vm1423 = vmand %vm911, %vm1295
    %vm1424 = vmand %vm912, %vm1296
    %vm1425 = vmand %vm913, %vm1297
    %vm1426 = vmand %vm914, %vm1298
    %vm1427 = vmand %vm915, %vm1299
    %vm1428 = vmand %vm916, %vm1300
    %vm1429 = vmand %vm917, %vm1301
    %vm1430 = vmand %vm918, %vm1302
    %vm1431 = vmand %vm919, %vm1303
    %vm1432 = vmand %vm920, %vm1304
    %vm1433 = vmand %vm921, %vm1305
    %vm1434 = vmand %vm922, %vm1306
    %vm1435 = vmand %vm923, %vm1307
    %vm1436 = vmand %vm924, %vm1308
    %vm1437 = vmand %vm925, %vm1309
    %vm1438 = vmand %vm926, %vm1310
    %vm1439 = vmand %vm927, %vm1311
    %vm1440 = vmand %vm928, %vm1312
    %v1441 = vsel %vm1313, 1, 0
    %v1442 = vsel %vm1314, 1, 0
    %v1443 = vsel %vm1315, 1, 0
    %v1444 = vsel %vm1316, 1, 0
    %v1445 = vsel %vm1317, 1, 0
    %v1446 = vsel %vm1318, 1, 0
    %v1447 = vsel %vm1319, 1, 0
    %v1448 = vsel %vm1320, 1, 0
    %v1449 = vsel %vm1321, 1, 0
    %v1450 = vsel %vm1322, 1, 0
    %v1451 = vsel %vm1323, 1, 0
    %v1452 = vsel %vm1324, 1, 0
    %v1453 = vsel %vm1325, 1, 0
    %v1454 = vsel %vm1326, 1, 0
    %v1455 = vsel %vm1327, 1, 0
    %v1456 = vsel %vm1328, 1, 0
    %v1457 = vsel %vm1329, 1, 0
    %v1458 = vsel %vm1330, 1, 0
    %v1459 = vsel %vm1331, 1, 0
    %v1460 = vsel %vm1332, 1, 0
    %v1461 = vsel %vm1333, 1, 0
    %v1462 = vsel %vm1334, 1, 0
    %v1463 = vsel %vm1335, 1, 0
    %v1464 = vsel %vm1336, 1, 0
    %v1465 = vsel %vm1337, 1, 0
    %v1466 = vsel %vm1338, 1, 0
    %v1467 = vsel %vm1339, 1, 0
    %v1468 = vsel %vm1340, 1, 0
    %v1469 = vsel %vm1341, 1, 0
    %v1470 = vsel %vm1342, 1, 0
    %v1471 = vsel %vm1343, 1, 0
    %v1472 = vsel %vm1344, 1, 0
    %v1473 = vsel %vm1345, 1, 0
    %v1474 = vsel %vm1346, 1, 0
    %v1475 = vsel %vm1347, 1, 0
    %v1476 = vsel %vm1348, 1, 0
    %v1477 = vsel %vm1349, 1, 0
    %v1478 = vsel %vm1350, 1, 0
    %v1479 = vsel %vm1351, 1, 0
    %v1480 = vsel %vm1352, 1, 0
    %v1481 = vsel %vm1353, 1, 0
    %v1482 = vsel %vm1354, 1, 0
    %v1483 = vsel %vm1355, 1, 0
    %v1484 = vsel %vm1356, 1, 0
    %v1485 = vsel %vm1357, 1, 0
    %v1486 = vsel %vm1358, 1, 0
    %v1487 = vsel %vm1359, 1, 0
    %v1488 = vsel %vm1360, 1, 0
    %v1489 = vsel %vm1361, 1, 0
    %v1490 = vsel %vm1362, 1, 0
    %v1491 = vsel %vm1363, 1, 0
    %v1492 = vsel %vm1364, 1, 0
    %v1493 = vsel %vm1365, 1, 0
    %v1494 = vsel %vm1366, 1, 0
    %v1495 = vsel %vm1367, 1, 0
    %v1496 = vsel %vm1368, 1, 0
    %v1497 = vsel %vm1369, 1, 0
    %v1498 = vsel %vm1370, 1, 0
    %v1499 = vsel %vm1371, 1, 0
    %v1500 = vsel %vm1372, 1, 0
    %v1501 = vsel %vm1373, 1, 0
    %v1502 = vsel %vm1374, 1, 0
    %v1503 = vsel %vm1375, 1, 0
    %v1504 = vsel %vm1376, 1, 0
    %v1505 = vsel %vm1377, 1, 0
    %v1506 = vsel %vm1378, 1, 0
    %v1507 = vsel %vm1379, 1, 0
    %v1508 = vsel %vm1380, 1, 0
    %v1509 = vsel %vm1381, 1, 0
    %v1510 = vsel %vm1382, 1, 0
    %v1511 = vsel %vm1383, 1, 0
    %v1512 = vsel %vm1384, 1, 0
    %v1513 = vsel %vm1385, 1, 0
    %v1514 = vsel %vm1386, 1, 0
    %v1515 = vsel %vm1387, 1, 0
    %v1516 = vsel %vm1388, 1, 0
    %v1517 = vsel %vm1389, 1, 0
    %v1518 = vsel %vm1390, 1, 0
    %v1519 = vsel %vm1391, 1, 0
    %v1520 = vsel %vm1392, 1, 0
    %v1521 = vsel %vm1393, 1, 0
    %v1522 = vsel %vm1394, 1, 0
    %v1523 = vsel %vm1395, 1, 0
    %v1524 = vsel %vm1396, 1, 0
    %v1525 = vsel %vm1397, 1, 0
    %v1526 = vsel %vm1398, 1, 0
    %v1527 = vsel %vm1399, 1, 0
    %v1528 = vsel %vm1400, 1, 0
    %v1529 = vsel %vm1401, 1, 0
    %v1530 = vsel %vm1402, 1, 0
    %v1531 = vsel %vm1403, 1, 0
    %v1532 = vsel %vm1404, 1, 0
    %v1533 = vsel %vm1405, 1, 0
    %v1534 = vsel %vm1406, 1, 0
    %v1535 = vsel %vm1407, 1, 0
    %v1536 = vsel %vm1408, 1, 0
    %v1537 = vsel %vm1409, 1, 0
    %v1538 = vsel %vm1410, 1, 0
    %v1539 = vsel %vm1411, 1, 0
    %v1540 = vsel %vm1412, 1, 0
    %v1541 = vsel %vm1413, 1, 0
    %v1542 = vsel %vm1414, 1, 0
    %v1543 = vsel %vm1415, 1, 0
    %v1544 = vsel %vm1416, 1, 0
    %v1545 = vsel %vm1417, 1, 0
    %v1546 = vsel %vm1418, 1, 0
    %v1547 = vsel %vm1419, 1, 0
    %v1548 = vsel %vm1420, 1, 0
    %v1549 = vsel %vm1421, 1, 0
    %v1550 = vsel %vm1422, 1, 0
    %v1551 = vsel %vm1423, 1, 0
    %v1552 = vsel %vm1424, 1, 0
    %v1553 = vsel %vm1425, 1, 0
    %v1554 = vsel %vm1426, 1, 0
    %v1555 = vsel %vm1427, 1, 0
    %v1556 = vsel %vm1428, 1, 0
    %v1557 = vsel %vm1429, 1, 0
    %v1558 = vsel %vm1430, 1, 0
    %v1559 = vsel %vm1431, 1, 0
    %v1560 = vsel %vm1432, 1, 0
    %v1561 = vsel %vm1433, 1, 0
    %v1562 = vsel %vm1434, 1, 0
    %v1563 = vsel %vm1435, 1, 0
    %v1564 = vsel %vm1436, 1, 0
    %v1565 = vsel %vm1437, 1, 0
    %v1566 = vsel %vm1438, 1, 0
    %v1567 = vsel %vm1439, 1, 0
    %v1568 = vsel %vm1440, 1, 0
    %v1569 = vcvt.s32.f32 %v1441
    %v1570 = vcvt.s32.f32 %v1442
    %v1571 = vcvt.s32.f32 %v1443
    %v1572 = vcvt.s32.f32 %v1444
    %v1573 = vcvt.s32.f32 %v1445
    %v1574 = vcvt.s32.f32 %v1446
    %v1575 = vcvt.s32.f32 %v1447
    %v1576 = vcvt.s32.f32 %v1448
    %v1577 = vcvt.s32.f32 %v1449
    %v1578 = vcvt.s32.f32 %v1450
    %v1579 = vcvt.s32.f32 %v1451
    %v1580 = vcvt.s32.f32 %v1452
    %v1581 = vcvt.s32.f32 %v1453
    %v1582 = vcvt.s32.f32 %v1454
    %v1583 = vcvt.s32.f32 %v1455
    %v1584 = vcvt.s32.f32 %v1456
    %v1585 = vcvt.s32.f32 %v1457
    %v1586 = vcvt.s32.f32 %v1458
    %v1587 = vcvt.s32.f32 %v1459
    %v1588 = vcvt.s32.f32 %v1460
    %v1589 = vcvt.s32.f32 %v1461
    %v1590 = vcvt.s32.f32 %v1462
    %v1591 = vcvt.s32.f32 %v1463
    %v1592 = vcvt.s32.f32 %v1464
    %v1593 = vcvt.s32.f32 %v1465
    %v1594 = vcvt.s32.f32 %v1466
    %v1595 = vcvt.s32.f32 %v1467
    %v1596 = vcvt.s32.f32 %v1468
    %v1597 = vcvt.s32.f32 %v1469
    %v1598 = vcvt.s32.f32 %v1470
    %v1599 = vcvt.s32.f32 %v1471
    %v1600 = vcvt.s32.f32 %v1472
    %v1601 = vcvt.s32.f32 %v1473
    %v1602 = vcvt.s32.f32 %v1474
    %v1603 = vcvt.s32.f32 %v1475
    %v1604 = vcvt.s32.f32 %v1476
    %v1605 = vcvt.s32.f32 %v1477
    %v1606 = vcvt.s32.f32 %v1478
    %v1607 = vcvt.s32.f32 %v1479
    %v1608 = vcvt.s32.f32 %v1480
    %v1609 = vcvt.s32.f32 %v1481
    %v1610 = vcvt.s32.f32 %v1482
    %v1611 = vcvt.s32.f32 %v1483
    %v1612 = vcvt.s32.f32 %v1484
    %v1613 = vcvt.s32.f32 %v1485
    %v1614 = vcvt.s32.f32 %v1486
    %v1615 = vcvt.s32.f32 %v1487
    %v1616 = vcvt.s32.f32 %v1488
    %v1617 = vcvt.s32.f32 %v1489
    %v1618 = vcvt.s32.f32 %v1490
    %v1619 = vcvt.s32.f32 %v1491
    %v1620 = vcvt.s32.f32 %v1492
    %v1621 = vcvt.s32.f32 %v1493
    %v1622 = vcvt.s32.f32 %v1494
    %v1623 = vcvt.s32.f32 %v1495
    %v1624 = vcvt.s32.f32 %v1496
    %v1625 = vcvt.s32.f32 %v1497
    %v1626 = vcvt.s32.f32 %v1498
    %v1627 = vcvt.s32.f32 %v1499
    %v1628 = vcvt.s32.f32 %v1500
    %v1629 = vcvt.s32.f32 %v1501
    %v1630 = vcvt.s32.f32 %v1502
    %v1631 = vcvt.s32.f32 %v1503
    %v1632 = vcvt.s32.f32 %v1504
    %v1633 = vcvt.s32.f32 %v1505
    %v1634 = vcvt.s32.f32 %v1506
    %v1635 = vcvt.s32.f32 %v1507
    %v1636 = vcvt.s32.f32 %v1508
    %v1637 = vcvt.s32.f32 %v1509
    %v1638 = vcvt.s32.f32 %v1510
    %v1639 = vcvt.s32.f32 %v1511
    %v1640 = vcvt.s32.f32 %v1512
    %v1641 = vcvt.s32.f32 %v1513
    %v1642 = vcvt.s32.f32 %v1514
    %v1643 = vcvt.s32.f32 %v1515
    %v1644 = vcvt.s32.f32 %v1516
    %v1645 = vcvt.s32.f32 %v1517
    %v1646 = vcvt.s32.f32 %v1518
    %v1647 = vcvt.s32.f32 %v1519
    %v1648 = vcvt.s32.f32 %v1520
    %v1649 = vcvt.s32.f32 %v1521
    %v1650 = vcvt.s32.f32 %v1522
    %v1651 = vcvt.s32.f32 %v1523
    %v1652 = vcvt.s32.f32 %v1524
    %v1653 = vcvt.s32.f32 %v1525
    %v1654 = vcvt.s32.f32 %v1526
    %v1655 = vcvt.s32.f32 %v1527
    %v1656 = vcvt.s32.f32 %v1528
    %v1657 = vcvt.s32.f32 %v1529
    %v1658 = vcvt.s32.f32 %v1530
    %v1659 = vcvt.s32.f32 %v1531
    %v1660 = vcvt.s32.f32 %v1532
    %v1661 = vcvt.s32.f32 %v1533
    %v1662 = vcvt.s32.f32 %v1534
    %v1663 = vcvt.s32.f32 %v1535
    %v1664 = vcvt.s32.f32 %v1536
    %v1665 = vcvt.s32.f32 %v1537
    %v1666 = vcvt.s32.f32 %v1538
    %v1667 = vcvt.s32.f32 %v1539
    %v1668 = vcvt.s32.f32 %v1540
    %v1669 = vcvt.s32.f32 %v1541
    %v1670 = vcvt.s32.f32 %v1542
    %v1671 = vcvt.s32.f32 %v1543
    %v1672 = vcvt.s32.f32 %v1544
    %v1673 = vcvt.s32.f32 %v1545
    %v1674 = vcvt.s32.f32 %v1546
    %v1675 = vcvt.s32.f32 %v1547
    %v1676 = vcvt.s32.f32 %v1548
    %v1677 = vcvt.s32.f32 %v1549
    %v1678 = vcvt.s32.f32 %v1550
    %v1679 = vcvt.s32.f32 %v1551
    %v1680 = vcvt.s32.f32 %v1552
    %v1681 = vcvt.s32.f32 %v1553
    %v1682 = vcvt.s32.f32 %v1554
    %v1683 = vcvt.s32.f32 %v1555
    %v1684 = vcvt.s32.f32 %v1556
    %v1685 = vcvt.s32.f32 %v1557
    %v1686 = vcvt.s32.f32 %v1558
    %v1687 = vcvt.s32.f32 %v1559
    %v1688 = vcvt.s32.f32 %v1560
    %v1689 = vcvt.s32.f32 %v1561
    %v1690 = vcvt.s32.f32 %v1562
    %v1691 = vcvt.s32.f32 %v1563
    %v1692 = vcvt.s32.f32 %v1564
    %v1693 = vcvt.s32.f32 %v1565
    %v1694 = vcvt.s32.f32 %v1566
    %v1695 = vcvt.s32.f32 %v1567
    %v1696 = vcvt.s32.f32 %v1568
    %vm1697 = vcmask 539648
    %1698 = vst.msk [vmem:[%s1] sm:$0xff] %vm1697, %v1569
    %1699 = vst.msk [vmem:[%s1 + $0x8] sm:$0xff] %vm1697, %v1570
    %1700 = vst.msk [vmem:[%s1 + $0x10] sm:$0xff] %vm1697, %v1571
    %1701 = vst.msk [vmem:[%s1 + $0x18] sm:$0xff] %vm1697, %v1572
    %1702 = vst.msk [vmem:[%s1 + $0x20] sm:$0xff] %vm1697, %v1573
    %1703 = vst.msk [vmem:[%s1 + $0x28] sm:$0xff] %vm1697, %v1574
    %1704 = vst.msk [vmem:[%s1 + $0x30] sm:$0xff] %vm1697, %v1575
    %1705 = vst.msk [vmem:[%s1 + $0x38] sm:$0xff] %vm1697, %v1576
    %1706 = vst.msk [vmem:[%s1 + $0x40] sm:$0xff] %vm1697, %v1577
    %1707 = vst.msk [vmem:[%s1 + $0x48] sm:$0xff] %vm1697, %v1578
    %1708 = vst.msk [vmem:[%s1 + $0x50] sm:$0xff] %vm1697, %v1579
    %1709 = vst.msk [vmem:[%s1 + $0x58] sm:$0xff] %vm1697, %v1580
    %1710 = vst.msk [vmem:[%s1 + $0x60] sm:$0xff] %vm1697, %v1581
    %1711 = vst.msk [vmem:[%s1 + $0x68] sm:$0xff] %vm1697, %v1582
    %1712 = vst.msk [vmem:[%s1 + $0x70] sm:$0xff] %vm1697, %v1583
    %1713 = vst.msk [vmem:[%s1 + $0x78] sm:$0xff] %vm1697, %v1584
    %1714 = vst.msk [vmem:[%s1 + $0x80] sm:$0xff] %vm1697, %v1585
    %1715 = vst.msk [vmem:[%s1 + $0x88] sm:$0xff] %vm1697, %v1586
    %1716 = vst.msk [vmem:[%s1 + $0x90] sm:$0xff] %vm1697, %v1587
    %1717 = vst.msk [vmem:[%s1 + $0x98] sm:$0xff] %vm1697, %v1588
    %1718 = vst.msk [vmem:[%s1 + $0xa0] sm:$0xff] %vm1697, %v1589
    %1719 = vst.msk [vmem:[%s1 + $0xa8] sm:$0xff] %vm1697, %v1590
    %1720 = vst.msk [vmem:[%s1 + $0xb0] sm:$0xff] %vm1697, %v1591
    %1721 = vst.msk [vmem:[%s1 + $0xb8] sm:$0xff] %vm1697, %v1592
    %1722 = vst.msk [vmem:[%s1 + $0xc0] sm:$0xff] %vm1697, %v1593
    %1723 = vst.msk [vmem:[%s1 + $0xc8] sm:$0xff] %vm1697, %v1594
    %1724 = vst.msk [vmem:[%s1 + $0xd0] sm:$0xff] %vm1697, %v1595
    %1725 = vst.msk [vmem:[%s1 + $0xd8] sm:$0xff] %vm1697, %v1596
    %1726 = vst.msk [vmem:[%s1 + $0xe0] sm:$0xff] %vm1697, %v1597
    %1727 = vst.msk [vmem:[%s1 + $0xe8] sm:$0xff] %vm1697, %v1598
    %1728 = vst.msk [vmem:[%s1 + $0xf0] sm:$0xff] %vm1697, %v1599
    %1729 = vst.msk [vmem:[%s1 + $0xf8] sm:$0xff] %vm1697, %v1600
    %1730 = vst.msk [vmem:[%s1 + $0x100] sm:$0xff] %vm1697, %v1601
    %1731 = vst.msk [vmem:[%s1 + $0x108] sm:$0xff] %vm1697, %v1602
    %1732 = vst.msk [vmem:[%s1 + $0x110] sm:$0xff] %vm1697, %v1603
    %1733 = vst.msk [vmem:[%s1 + $0x118] sm:$0xff] %vm1697, %v1604
    %1734 = vst.msk [vmem:[%s1 + $0x120] sm:$0xff] %vm1697, %v1605
    %1735 = vst.msk [vmem:[%s1 + $0x128] sm:$0xff] %vm1697, %v1606
    %1736 = vst.msk [vmem:[%s1 + $0x130] sm:$0xff] %vm1697, %v1607
    %1737 = vst.msk [vmem:[%s1 + $0x138] sm:$0xff] %vm1697, %v1608
    %1738 = vst.msk [vmem:[%s1 + $0x140] sm:$0xff] %vm1697, %v1609
    %1739 = vst.msk [vmem:[%s1 + $0x148] sm:$0xff] %vm1697, %v1610
    %1740 = vst.msk [vmem:[%s1 + $0x150] sm:$0xff] %vm1697, %v1611
    %1741 = vst.msk [vmem:[%s1 + $0x158] sm:$0xff] %vm1697, %v1612
    %1742 = vst.msk [vmem:[%s1 + $0x160] sm:$0xff] %vm1697, %v1613
    %1743 = vst.msk [vmem:[%s1 + $0x168] sm:$0xff] %vm1697, %v1614
    %1744 = vst.msk [vmem:[%s1 + $0x170] sm:$0xff] %vm1697, %v1615
    %1745 = vst.msk [vmem:[%s1 + $0x178] sm:$0xff] %vm1697, %v1616
    %1746 = vst.msk [vmem:[%s1 + $0x180] sm:$0xff] %vm1697, %v1617
    %1747 = vst.msk [vmem:[%s1 + $0x188] sm:$0xff] %vm1697, %v1618
    %1748 = vst.msk [vmem:[%s1 + $0x190] sm:$0xff] %vm1697, %v1619
    %1749 = vst.msk [vmem:[%s1 + $0x198] sm:$0xff] %vm1697, %v1620
    %1750 = vst.msk [vmem:[%s1 + $0x1a0] sm:$0xff] %vm1697, %v1621
    %1751 = vst.msk [vmem:[%s1 + $0x1a8] sm:$0xff] %vm1697, %v1622
    %1752 = vst.msk [vmem:[%s1 + $0x1b0] sm:$0xff] %vm1697, %v1623
    %1753 = vst.msk [vmem:[%s1 + $0x1b8] sm:$0xff] %vm1697, %v1624
    %1754 = vst.msk [vmem:[%s1 + $0x1c0] sm:$0xff] %vm1697, %v1625
    %1755 = vst.msk [vmem:[%s1 + $0x1c8] sm:$0xff] %vm1697, %v1626
    %1756 = vst.msk [vmem:[%s1 + $0x1d0] sm:$0xff] %vm1697, %v1627
    %1757 = vst.msk [vmem:[%s1 + $0x1d8] sm:$0xff] %vm1697, %v1628
    %1758 = vst.msk [vmem:[%s1 + $0x1e0] sm:$0xff] %vm1697, %v1629
    %1759 = vst.msk [vmem:[%s1 + $0x1e8] sm:$0xff] %vm1697, %v1630
    %1760 = vst.msk [vmem:[%s1 + $0x1f0] sm:$0xff] %vm1697, %v1631
    %1761 = vst.msk [vmem:[%s1 + $0x1f8] sm:$0xff] %vm1697, %v1632
    %1762 = vst.msk [vmem:[%s1 + $0x200] sm:$0xff] %vm1697, %v1633
    %1763 = vst.msk [vmem:[%s1 + $0x208] sm:$0xff] %vm1697, %v1634
    %1764 = vst.msk [vmem:[%s1 + $0x210] sm:$0xff] %vm1697, %v1635
    %1765 = vst.msk [vmem:[%s1 + $0x218] sm:$0xff] %vm1697, %v1636
    %1766 = vst.msk [vmem:[%s1 + $0x220] sm:$0xff] %vm1697, %v1637
    %1767 = vst.msk [vmem:[%s1 + $0x228] sm:$0xff] %vm1697, %v1638
    %1768 = vst.msk [vmem:[%s1 + $0x230] sm:$0xff] %vm1697, %v1639
    %1769 = vst.msk [vmem:[%s1 + $0x238] sm:$0xff] %vm1697, %v1640
    %1770 = vst.msk [vmem:[%s1 + $0x240] sm:$0xff] %vm1697, %v1641
    %1771 = vst.msk [vmem:[%s1 + $0x248] sm:$0xff] %vm1697, %v1642
    %1772 = vst.msk [vmem:[%s1 + $0x250] sm:$0xff] %vm1697, %v1643
    %1773 = vst.msk [vmem:[%s1 + $0x258] sm:$0xff] %vm1697, %v1644
    %1774 = vst.msk [vmem:[%s1 + $0x260] sm:$0xff] %vm1697, %v1645
    %1775 = vst.msk [vmem:[%s1 + $0x268] sm:$0xff] %vm1697, %v1646
    %1776 = vst.msk [vmem:[%s1 + $0x270] sm:$0xff] %vm1697, %v1647
    %1777 = vst.msk [vmem:[%s1 + $0x278] sm:$0xff] %vm1697, %v1648
    %1778 = vst.msk [vmem:[%s1 + $0x280] sm:$0xff] %vm1697, %v1649
    %1779 = vst.msk [vmem:[%s1 + $0x288] sm:$0xff] %vm1697, %v1650
    %1780 = vst.msk [vmem:[%s1 + $0x290] sm:$0xff] %vm1697, %v1651
    %1781 = vst.msk [vmem:[%s1 + $0x298] sm:$0xff] %vm1697, %v1652
    %1782 = vst.msk [vmem:[%s1 + $0x2a0] sm:$0xff] %vm1697, %v1653
    %1783 = vst.msk [vmem:[%s1 + $0x2a8] sm:$0xff] %vm1697, %v1654
    %1784 = vst.msk [vmem:[%s1 + $0x2b0] sm:$0xff] %vm1697, %v1655
    %1785 = vst.msk [vmem:[%s1 + $0x2b8] sm:$0xff] %vm1697, %v1656
    %1786 = vst.msk [vmem:[%s1 + $0x2c0] sm:$0xff] %vm1697, %v1657
    %1787 = vst.msk [vmem:[%s1 + $0x2c8] sm:$0xff] %vm1697, %v1658
    %1788 = vst.msk [vmem:[%s1 + $0x2d0] sm:$0xff] %vm1697, %v1659
    %1789 = vst.msk [vmem:[%s1 + $0x2d8] sm:$0xff] %vm1697, %v1660
    %1790 = vst.msk [vmem:[%s1 + $0x2e0] sm:$0xff] %vm1697, %v1661
    %1791 = vst.msk [vmem:[%s1 + $0x2e8] sm:$0xff] %vm1697, %v1662
    %1792 = vst.msk [vmem:[%s1 + $0x2f0] sm:$0xff] %vm1697, %v1663
    %1793 = vst.msk [vmem:[%s1 + $0x2f8] sm:$0xff] %vm1697, %v1664
    %1794 = vst.msk [vmem:[%s1 + $0x300] sm:$0xff] %vm1697, %v1665
    %1795 = vst.msk [vmem:[%s1 + $0x308] sm:$0xff] %vm1697, %v1666
    %1796 = vst.msk [vmem:[%s1 + $0x310] sm:$0xff] %vm1697, %v1667
    %1797 = vst.msk [vmem:[%s1 + $0x318] sm:$0xff] %vm1697, %v1668
    %1798 = vst.msk [vmem:[%s1 + $0x320] sm:$0xff] %vm1697, %v1669
    %1799 = vst.msk [vmem:[%s1 + $0x328] sm:$0xff] %vm1697, %v1670
    %1800 = vst.msk [vmem:[%s1 + $0x330] sm:$0xff] %vm1697, %v1671
    %1801 = vst.msk [vmem:[%s1 + $0x338] sm:$0xff] %vm1697, %v1672
    %1802 = vst.msk [vmem:[%s1 + $0x340] sm:$0xff] %vm1697, %v1673
    %1803 = vst.msk [vmem:[%s1 + $0x348] sm:$0xff] %vm1697, %v1674
    %1804 = vst.msk [vmem:[%s1 + $0x350] sm:$0xff] %vm1697, %v1675
    %1805 = vst.msk [vmem:[%s1 + $0x358] sm:$0xff] %vm1697, %v1676
    %1806 = vst.msk [vmem:[%s1 + $0x360] sm:$0xff] %vm1697, %v1677
    %1807 = vst.msk [vmem:[%s1 + $0x368] sm:$0xff] %vm1697, %v1678
    %1808 = vst.msk [vmem:[%s1 + $0x370] sm:$0xff] %vm1697, %v1679
    %1809 = vst.msk [vmem:[%s1 + $0x378] sm:$0xff] %vm1697, %v1680
    %1810 = vst.msk [vmem:[%s1 + $0x380] sm:$0xff] %vm1697, %v1681
    %1811 = vst.msk [vmem:[%s1 + $0x388] sm:$0xff] %vm1697, %v1682
    %1812 = vst.msk [vmem:[%s1 + $0x390] sm:$0xff] %vm1697, %v1683
    %1813 = vst.msk [vmem:[%s1 + $0x398] sm:$0xff] %vm1697, %v1684
    %1814 = vst.msk [vmem:[%s1 + $0x3a0] sm:$0xff] %vm1697, %v1685
    %1815 = vst.msk [vmem:[%s1 + $0x3a8] sm:$0xff] %vm1697, %v1686
    %1816 = vst.msk [vmem:[%s1 + $0x3b0] sm:$0xff] %vm1697, %v1687
    %1817 = vst.msk [vmem:[%s1 + $0x3b8] sm:$0xff] %vm1697, %v1688
    %1818 = vst.msk [vmem:[%s1 + $0x3c0] sm:$0xff] %vm1697, %v1689
    %1819 = vst.msk [vmem:[%s1 + $0x3c8] sm:$0xff] %vm1697, %v1690
    %1820 = vst.msk [vmem:[%s1 + $0x3d0] sm:$0xff] %vm1697, %v1691
    %1821 = vst.msk [vmem:[%s1 + $0x3d8] sm:$0xff] %vm1697, %v1692
    %1822 = vst.msk [vmem:[%s1 + $0x3e0] sm:$0xff] %vm1697, %v1693
    %1823 = vst.msk [vmem:[%s1 + $0x3e8] sm:$0xff] %vm1697, %v1694
    %1824 = vst.msk [vmem:[%s1 + $0x3f0] sm:$0xff] %vm1697, %v1695
    %1825 = vst.msk [vmem:[%s1 + $0x3f8] sm:$0xff] %vm1697, %v1696
    // Predicated region
    $region10: #{tpu_custom_call.1} parent=1 // pred_check
      _
    $region11: #{tpu_custom_call.1} parent=1 // pred_check_branch
      %1827 = sbr.rel (0) target = $region13
    $region12: #{tpu_custom_call.1} parent=1 // pred_region
      _
    $region13: #{tpu_custom_call.1} parent=1 // pred_fallthru
      _
    // Predicated region
    $region14: #{tpu_custom_call.1} parent=1 // pred_check
      _
    $region15: #{tpu_custom_call.1} parent=1 // pred_check_branch
      %1829 = sbr.rel (0) target = $region17
    $region16: #{tpu_custom_call.1} parent=1 // pred_region
      _
    $region17: #{tpu_custom_call.1} parent=1 // pred_fallthru
      _
    %1830 = vsyncpa [#allocation3], 1

</llo_original>
